<compile_context>
chip_gen: v7x
topology: tpu7x:2x2x1
jax: 0.10.0
libtpu: 0.0.40
codegen_flags: <defaults>
</compile_context>

<pallas_src>
import functools

import jax
import jax.numpy as jnp
from jax.experimental import pallas as pl
from jax.experimental.pallas import tpu as pltpu

_LANE = 128
_SUBLANE = 8


def _round_up(x, m):
    return ((x + m - 1) // m) * m


def _vmem_limit_bytes():
    """Generation-aware scoped-VMEM limit: ~3/4 of physical, capped at 100 MiB."""
    cap = 64 * 1024 * 1024  # conservative fallback (v7x physical per TC)
    try:
        info = pltpu.get_tpu_info()
        cap = int(getattr(info, "vmem_capacity_bytes", cap))
    except Exception:
        pass
    return int(min(cap * 3 // 4, 100 * 1024 * 1024))


# ----------------------------------------------------------------------------
# Fused Pallas kernel (whole abstractor, one batch tile per grid step)
# ----------------------------------------------------------------------------
def _make_fused_kernel(kinds, n_lin):
    """Ref order (feature axis = lanes; hidden/out widths padded to 128):
      inputs : L, U (TB, D_in), then per linear layer: W^T, bias(1, Dout_p)
      outputs: L_final, U_final, per ReLU: hidden_L, hidden_U, soundness tile
    Activations stay in vregs between layers; only hidden/final bounds are
    stored (lane-dense, unmasked stores)."""
    n_in = 2 + 2 * n_lin

    def kernel(*refs):
        in_refs = refs[:n_in]
        out_refs = refs[n_in:]
        sound_ref = out_refs[-1]

        l = in_refs[0][...]
        u = in_refs[1][...]
        min_gap = jnp.float32(jnp.inf)
        lin_i = 0
        relu_i = 0
        for kind in kinds:
            if kind == "linear":
                wt = in_refs[2 + 2 * lin_i][...]    # (Din[_p], Dout_p) = W^T
                bias = in_refs[3 + 2 * lin_i][...]  # (1, Dout_p)
                awt = jnp.abs(wt)                   # VPU work, hides under MXU
                c = (l + u) * 0.5
                r = (u - l) * 0.5
                m = jnp.dot(c, wt, preferred_element_type=jnp.float32)
                d = jnp.dot(r, awt, preferred_element_type=jnp.float32)
                l = m - d + bias
                u = m + d + bias
                # Interval soundness is structural (d >= 0); this reduction is
                # effectively a NaN/Inf guard replacing the per-layer asserts.
                min_gap = jnp.minimum(min_gap, jnp.min(u - l))
                lin_i += 1
            else:  # "relu": record pre-ReLU (hidden) bounds, then clamp
                out_refs[2 + 2 * relu_i][...] = l
                out_refs[3 + 2 * relu_i][...] = u
                l = jnp.maximum(l, 0.0)
                u = jnp.maximum(u, 0.0)
                relu_i += 1
        out_refs[0][...] = l
        out_refs[1][...] = u
        sound_ref[...] = jnp.full(sound_ref.shape, min_gap, jnp.float32)

    return kernel


# ----------------------------------------------------------------------------
# DeepPolyLayerWrapper equivalent
# ----------------------------------------------------------------------------
class DeepPolyLayerWrapperPallas:
    """Mirrors DeepPolyLayerWrapper.forward over a synthetic interval abstractor."""

    def __init__(self, layers):
        # layers: list of ("linear", W, b) or ("relu",)
        self.abstractor = layers
        kinds = tuple(layer[0] for layer in layers)
        assert kinds and kinds[0] == "linear", "abstractor must start with linear"

        n_lin = sum(1 for k in kinds if k == "linear")

        lin_layers = [layer for layer in layers if layer[0] == "linear"]
        d_in = int(lin_layers[0][1].shape[1])

        # Pre-pad / pre-transpose the (constant) weights once.  Zero padding of
        # weight rows/cols AND bias keeps padded lanes exactly 0 through every
        # layer, so padding never leaks into real lanes.  First-layer
        # contraction dim stays unpadded (block == full array dim is legal).
        params = []
        relu_widths = []                 # (unpadded, padded) width at each ReLU
        cur_d, cur_d_p = d_in, d_in
        for layer in layers:
            if layer[0] == "linear":
                _, w, b = layer
                w = jnp.asarray(w, jnp.float32)
                b = jnp.asarray(b, jnp.float32)
                d_out, d_k = int(w.shape[0]), int(w.shape[1])
                assert d_k == cur_d, "layer dims must chain"
                d_out_p = _round_up(d_out, _LANE)
                wt = jnp.zeros((cur_d_p, d_out_p), jnp.float32)
                wt = wt.at[:d_k, :d_out].set(w.T)
                bias = jnp.zeros((1, d_out_p), jnp.float32).at[0, :d_out].set(b)
                params += [wt, bias]
                cur_d, cur_d_p = d_out, d_out_p
            else:
                relu_widths.append((cur_d, cur_d_p))

        self._kinds = kinds
        self._params = tuple(params)
        self._d_in = d_in
        self._d_out, self._d_out_p = cur_d, cur_d_p
        self._relu_widths = tuple(relu_widths)
        self._max_width = max([d_in] + [int(p.shape[1]) for p in params[0::2]])
        self._kernel = _make_fused_kernel(kinds, n_lin)
        self._vmem_limit = _vmem_limit_bytes()

        # Two jitted variants: single-buffered resident weights (preferred) and
        # a fallback without pipeline_mode=, chosen lazily on first call.
        self._fwd_candidates = [
            jax.jit(functools.partial(self._fwd_impl, True)),
            jax.jit(functools.partial(self._fwd_impl, False)),
        ]
        self._fwd = None

    # -- jitted implementation ------------------------------------------------
    def _fwd_impl(self, single_buffer_weights, lower, upper, *params):
        B, d_in = lower.shape
        assert d_in == self._d_in
        d_out, d_out_p = self._d_out, self._d_out_p

        # Batch tile: multiple of 8 sublanes; capped so ~4 live (TB, max_width)
        # f32 temporaries fit the 64-vreg file (no spills), and at 128 so the
        # pipeline gets multiple steps at larger B.
        b8 = _round_up(B, _SUBLANE)
        tb_vreg = max(_SUBLANE,
                      ((16384 // max(self._max_width, 1)) // _SUBLANE) * _SUBLANE)
        tb = max(_SUBLANE, min(128, b8, tb_vreg))
        b_pad = _round_up(B, tb)
        n_tiles = b_pad // tb

        def prep(x):
            x = jnp.asarray(x, jnp.float32)
            if b_pad != B:
                x = jnp.pad(x, ((0, b_pad - B), (0, 0)))
            return x

        inputs = [prep(lower), prep(upper)]
        act_specs = [pl.BlockSpec((tb, d_in), lambda i: (i, 0))] * 2

        w_kwargs = {"pipeline_mode": pl.Buffered(1)} if single_buffer_weights else {}
        weight_specs = []
        for p in params:
            inputs.append(p)
            # Constant index_map: resident in VMEM across all grid steps.
            weight_specs.append(pl.BlockSpec(p.shape, lambda i: (0, 0), **w_kwargs))

        out_shapes = [jax.ShapeDtypeStruct((b_pad, d_out_p), jnp.float32)] * 2
        out_specs = [pl.BlockSpec((tb, d_out_p), lambda i: (i, 0))] * 2
        for (_, dp) in self._relu_widths:
            out_shapes += [jax.ShapeDtypeStruct((b_pad, dp), jnp.float32)] * 2
            out_specs += [pl.BlockSpec((tb, dp), lambda i: (i, 0))] * 2
        # Per-tile soundness (min-gap) flag, one lane-aligned tile per step.
        out_shapes.append(
            jax.ShapeDtypeStruct((n_tiles, _SUBLANE, _LANE), jnp.float32))
        out_specs.append(pl.BlockSpec((1, _SUBLANE, _LANE), lambda i: (i, 0, 0)))

        outs = pl.pallas_call(
            self._kernel,
            out_shape=tuple(out_shapes),
            grid=(n_tiles,),
            in_specs=act_specs + weight_specs,
            out_specs=tuple(out_specs),
            compiler_params=pltpu.CompilerParams(
                dimension_semantics=("parallel",),   # megacore sharding on v7x
                vmem_limit_bytes=self._vmem_limit,
            ),
        )(*inputs)

        # Slice away padding, then the module's pack/permute glue.
        lo = outs[0][:B, :d_out]
        uo = outs[1][:B, :d_out]
        final = (lo.T, uo.T)                         # bounds[...,k].transpose(0,1)

        hidden = []
        for idx, (dw, _) in enumerate(self._relu_widths):
            hl = outs[2 + 2 * idx][:B, :dw]
            hu = outs[3 + 2 * idx][:B, :dw]
            packed = jnp.stack((hl, hu), axis=-1)            # (B, D, 2)
            hidden.append(jnp.transpose(packed, (1, 2, 0)))  # (D, 2, B)

        sound = jnp.all(outs[-1][:, 0, 0] >= 0.0)    # tiny (n_tiles,) reduction
        return final, tuple(hidden), sound

    def _run(self, *args):
        if self._fwd is not None:
            return self._fwd(*args)
        last_exc = None
        for cand in self._fwd_candidates:
            try:
                out = cand(*args)
                self._fwd = cand
                return out
            except Exception as exc:   # e.g. pl.Buffered(1) unsupported -> fallback
                last_exc = exc
        raise last_exc

    # -- public API -----------------------------------------------------------
    def forward(self, lower, upper, assignment=None,
                return_hidden_bounds=False, reset_param=False,
                check_soundness=False):
        # TODO(synk): beta (learned slope) params of BatchReLUTransformer are not
        # modeled by this interval abstractor; reset_param / reset_beta and
        # `assignment` are no-ops here.
        final, hidden, sound = self._run(lower, upper, *self._params)
        if check_soundness:
            # Opt-in (debug) host check: forces one device->host sync.  For the
            # center/radius formulation it can only fire on NaN/Inf.
            assert bool(sound), "unsound bounds (NaN/Inf encountered)"
        if return_hidden_bounds:
            return final, list(hidden)
        return final


# ----------------------------------------------------------------------------
# Driver
# ----------------------------------------------------------------------------
if __name__ == "__main__":
    key = jax.random.PRNGKey(0)
    kx, kw1, kb1, kw2, kb2, kw3, kb3 = jax.random.split(key, 7)

    B, D_IN, D_H, D_OUT = 8, 32, 64, 16

    # Deterministic synthetic abstractor parameters.
    w1 = jax.random.normal(kw1, (D_H, D_IN), jnp.float32) * 0.1
    b1 = jax.random.normal(kb1, (D_H,), jnp.float32) * 0.1
    w2 = jax.random.normal(kw2, (D_H, D_H), jnp.float32) * 0.1
    b2 = jax.random.normal(kb2, (D_H,), jnp.float32) * 0.1
    w3 = jax.random.normal(kw3, (D_OUT, D_H), jnp.float32) * 0.1
    b3 = jax.random.normal(kb3, (D_OUT,), jnp.float32) * 0.1

    wrapper = DeepPolyLayerWrapperPallas([
        ("linear", w1, b1),
        ("relu",),
        ("linear", w2, b2),
        ("relu",),
        ("linear", w3, b3),
    ])

    # Input interval bounds, shape (B, D_IN), with lower <= upper.
    center = jax.random.normal(kx, (B, D_IN), jnp.float32)
    eps = 0.05
    lower = center - eps
    upper = center + eps

    (lo_out, up_out), hidden = wrapper.forward(
        lower, upper, return_hidden_bounds=True, check_soundness=True)
    jax.block_until_ready((lo_out, up_out, hidden))

    # Sanity: output shapes (D_OUT, B), hidden shapes (D, 2, B), soundness.
    assert lo_out.shape == (D_OUT, B) and up_out.shape == (D_OUT, B)
    assert hidden[0].shape == (D_H, 2, B) and hidden[1].shape == (D_H, 2, B)
    assert bool(jnp.all(lo_out <= up_out))
    for hb in hidden:
        assert bool(jnp.all(hb[:, 0, :] <= hb[:, 1, :]))

    # Reference check vs pure JAX (W+/W- formulation; mathematically identical
    # to the kernel's center/radius form, equal up to f32 rounding).
    def ref_forward(l, u):
        hid = []
        for (w, b) in [(w1, b1), (w2, b2), (w3, b3)]:
            wp, wn = jnp.maximum(w, 0.0), jnp.minimum(w, 0.0)
            nl = l @ wp.T + u @ wn.T + b
            nu = u @ wp.T + l @ wn.T + b
            l, u = nl, nu
            if w is not w3:
                hid.append(jnp.transpose(jnp.stack((l, u), -1), (1, 2, 0)))
                l, u = jnp.maximum(l, 0.0), jnp.maximum(u, 0.0)
        return (l.T, u.T), hid

    (rl, ru), rhid = ref_forward(lower, upper)
    assert jnp.allclose(lo_out, rl, atol=1e-4)
    assert jnp.allclose(up_out, ru, atol=1e-4)
    for hb, rb in zip(hidden, rhid):
        assert jnp.allclose(hb, rb, atol=1e-4)

    print("KERNEL_OK")
</pallas_src>

<mosaic_0001>
module attributes {stable_mosaic.version = 11 : i64} {
  func.func @kernel(%arg0: i32, %arg1: memref<8x32xf32, #tpu.memory_space<vmem>>, %arg2: memref<8x32xf32, #tpu.memory_space<vmem>>, %arg3: memref<32x128xf32, #tpu.memory_space<vmem>>, %arg4: memref<1x128xf32, #tpu.memory_space<vmem>>, %arg5: memref<128x128xf32, #tpu.memory_space<vmem>>, %arg6: memref<1x128xf32, #tpu.memory_space<vmem>>, %arg7: memref<128x128xf32, #tpu.memory_space<vmem>>, %arg8: memref<1x128xf32, #tpu.memory_space<vmem>>, %arg9: memref<8x128xf32, #tpu.memory_space<vmem>>, %arg10: memref<8x128xf32, #tpu.memory_space<vmem>>, %arg11: memref<8x128xf32, #tpu.memory_space<vmem>>, %arg12: memref<8x128xf32, #tpu.memory_space<vmem>>, %arg13: memref<8x128xf32, #tpu.memory_space<vmem>>, %arg14: memref<8x128xf32, #tpu.memory_space<vmem>>, %arg15: memref<1x8x128xf32, #tpu.memory_space<vmem>>) attributes {dimension_semantics = [#tpu.dimension_semantics<parallel>], iteration_bounds = array<i64: 1>, scalar_prefetch = 0 : i64, scratch_operands = 0 : i64, tpu.core_type = #tpu.core_type<tc>, window_params = [{transform_indices = @transform_0, window_bounds = array<i64: 8, 32>}, {transform_indices = @transform_1, window_bounds = array<i64: 8, 32>}, {pipeline_mode = #tpu.pipeline_mode<synchronous>, transform_indices = @transform_2, window_bounds = array<i64: 32, 128>}, {pipeline_mode = #tpu.pipeline_mode<synchronous>, transform_indices = @transform_3, window_bounds = array<i64: 1, 128>}, {pipeline_mode = #tpu.pipeline_mode<synchronous>, transform_indices = @transform_4, window_bounds = array<i64: 128, 128>}, {pipeline_mode = #tpu.pipeline_mode<synchronous>, transform_indices = @transform_5, window_bounds = array<i64: 1, 128>}, {pipeline_mode = #tpu.pipeline_mode<synchronous>, transform_indices = @transform_6, window_bounds = array<i64: 128, 128>}, {pipeline_mode = #tpu.pipeline_mode<synchronous>, transform_indices = @transform_7, window_bounds = array<i64: 1, 128>}, {transform_indices = @transform_8, window_bounds = array<i64: 8, 128>}, {transform_indices = @transform_9, window_bounds = array<i64: 8, 128>}, {transform_indices = @transform_10, window_bounds = array<i64: 8, 128>}, {transform_indices = @transform_11, window_bounds = array<i64: 8, 128>}, {transform_indices = @transform_12, window_bounds = array<i64: 8, 128>}, {transform_indices = @transform_13, window_bounds = array<i64: 8, 128>}, {transform_indices = @transform_14, window_bounds = array<i64: 1, 8, 128>}]} {
    %c0 = arith.constant 0 : index
    %c0_0 = arith.constant 0 : index
    %0 = vector.load %arg1[%c0, %c0_0] : memref<8x32xf32, #tpu.memory_space<vmem>>, vector<8x32xf32>
    %c0_1 = arith.constant 0 : index
    %c0_2 = arith.constant 0 : index
    %1 = vector.load %arg2[%c0_1, %c0_2] : memref<8x32xf32, #tpu.memory_space<vmem>>, vector<8x32xf32>
    %c0_3 = arith.constant 0 : index
    %c0_4 = arith.constant 0 : index
    %2 = vector.load %arg3[%c0_3, %c0_4] : memref<32x128xf32, #tpu.memory_space<vmem>>, vector<32x128xf32>
    %c0_5 = arith.constant 0 : index
    %c0_6 = arith.constant 0 : index
    %3 = vector.load %arg4[%c0_5, %c0_6] : memref<1x128xf32, #tpu.memory_space<vmem>>, vector<1x128xf32>
    %4 = math.absf %2 : vector<32x128xf32>
    %5 = arith.addf %0, %1 : vector<8x32xf32>
    %cst = arith.constant 5.000000e-01 : f32
    %6 = vector.broadcast %cst : f32 to vector<8x32xf32>
    %7 = arith.mulf %5, %6 : vector<8x32xf32>
    %8 = arith.subf %1, %0 : vector<8x32xf32>
    %cst_7 = arith.constant 5.000000e-01 : f32
    %9 = vector.broadcast %cst_7 : f32 to vector<8x32xf32>
    %10 = arith.mulf %8, %9 : vector<8x32xf32>
    %cst_8 = arith.constant dense<0.000000e+00> : vector<8x128xf32>
    %11 = tpu.matmul %7, %2, %cst_8 {dimension_numbers = #tpu.dot_dimension_numbers<[1], [0], [0], [1], [0, 0, 1, 1], [], []>} : vector<8x32xf32>, vector<32x128xf32>, vector<8x128xf32> -> vector<8x128xf32>
    %cst_9 = arith.constant dense<0.000000e+00> : vector<8x128xf32>
    %12 = tpu.matmul %10, %4, %cst_9 {dimension_numbers = #tpu.dot_dimension_numbers<[1], [0], [0], [1], [0, 0, 1, 1], [], []>} : vector<8x32xf32>, vector<32x128xf32>, vector<8x128xf32> -> vector<8x128xf32>
    %13 = arith.subf %11, %12 : vector<8x128xf32>
    %14 = vector.broadcast %3 : vector<1x128xf32> to vector<8x128xf32>
    %15 = arith.addf %13, %14 : vector<8x128xf32>
    %16 = arith.addf %11, %12 : vector<8x128xf32>
    %17 = vector.broadcast %3 : vector<1x128xf32> to vector<8x128xf32>
    %18 = arith.addf %16, %17 : vector<8x128xf32>
    %19 = arith.subf %18, %15 : vector<8x128xf32>
    %20 = vector.shape_cast %19 : vector<8x128xf32> to vector<1x8x128xf32>
    %cst_10 = arith.constant dense<0x7F800000> : vector<1xf32>
    %21 = vector.multi_reduction <minimumf>, %20, %cst_10 [1, 2] : vector<1x8x128xf32> to vector<1xf32>
    %22 = vector.shape_cast %21 : vector<1xf32> to vector<1x1x1xf32>
    %23 = vector.extract %22[0, 0, 0] : f32 from vector<1x1x1xf32>
    %cst_11 = arith.constant 0x7F800000 : f32
    %24 = arith.minimumf %cst_11, %23 : f32
    %c0_12 = arith.constant 0 : index
    %c0_13 = arith.constant 0 : index
    %25 = vector.load %arg11[%c0_12, %c0_13] : memref<8x128xf32, #tpu.memory_space<vmem>>, vector<8x128xf32>
    tpu.vector_store %arg11[%c0_12, %c0_13], %15 {strides = array<i32>} : memref<8x128xf32, #tpu.memory_space<vmem>>, vector<8x128xf32>,
    %c0_14 = arith.constant 0 : index
    %c0_15 = arith.constant 0 : index
    %26 = vector.load %arg12[%c0_14, %c0_15] : memref<8x128xf32, #tpu.memory_space<vmem>>, vector<8x128xf32>
    tpu.vector_store %arg12[%c0_14, %c0_15], %18 {strides = array<i32>} : memref<8x128xf32, #tpu.memory_space<vmem>>, vector<8x128xf32>,
    %cst_16 = arith.constant 0.000000e+00 : f32
    %27 = vector.broadcast %cst_16 : f32 to vector<8x128xf32>
    %28 = arith.maximumf %15, %27 : vector<8x128xf32>
    %cst_17 = arith.constant 0.000000e+00 : f32
    %29 = vector.broadcast %cst_17 : f32 to vector<8x128xf32>
    %30 = arith.maximumf %18, %29 : vector<8x128xf32>
    %c0_18 = arith.constant 0 : index
    %c0_19 = arith.constant 0 : index
    %31 = vector.load %arg5[%c0_18, %c0_19] : memref<128x128xf32, #tpu.memory_space<vmem>>, vector<128x128xf32>
    %c0_20 = arith.constant 0 : index
    %c0_21 = arith.constant 0 : index
    %32 = vector.load %arg6[%c0_20, %c0_21] : memref<1x128xf32, #tpu.memory_space<vmem>>, vector<1x128xf32>
    %33 = math.absf %31 : vector<128x128xf32>
    %34 = arith.addf %28, %30 : vector<8x128xf32>
    %cst_22 = arith.constant 5.000000e-01 : f32
    %35 = vector.broadcast %cst_22 : f32 to vector<8x128xf32>
    %36 = arith.mulf %34, %35 : vector<8x128xf32>
    %37 = arith.subf %30, %28 : vector<8x128xf32>
    %cst_23 = arith.constant 5.000000e-01 : f32
    %38 = vector.broadcast %cst_23 : f32 to vector<8x128xf32>
    %39 = arith.mulf %37, %38 : vector<8x128xf32>
    %cst_24 = arith.constant dense<0.000000e+00> : vector<8x128xf32>
    %40 = tpu.matmul %36, %31, %cst_24 {dimension_numbers = #tpu.dot_dimension_numbers<[1], [0], [0], [1], [0, 0, 1, 1], [], []>} : vector<8x128xf32>, vector<128x128xf32>, vector<8x128xf32> -> vector<8x128xf32>
    %cst_25 = arith.constant dense<0.000000e+00> : vector<8x128xf32>
    %41 = tpu.matmul %39, %33, %cst_25 {dimension_numbers = #tpu.dot_dimension_numbers<[1], [0], [0], [1], [0, 0, 1, 1], [], []>} : vector<8x128xf32>, vector<128x128xf32>, vector<8x128xf32> -> vector<8x128xf32>
    %42 = arith.subf %40, %41 : vector<8x128xf32>
    %43 = vector.broadcast %32 : vector<1x128xf32> to vector<8x128xf32>
    %44 = arith.addf %42, %43 : vector<8x128xf32>
    %45 = arith.addf %40, %41 : vector<8x128xf32>
    %46 = vector.broadcast %32 : vector<1x128xf32> to vector<8x128xf32>
    %47 = arith.addf %45, %46 : vector<8x128xf32>
    %48 = arith.subf %47, %44 : vector<8x128xf32>
    %49 = vector.shape_cast %48 : vector<8x128xf32> to vector<1x8x128xf32>
    %cst_26 = arith.constant dense<0x7F800000> : vector<1xf32>
    %50 = vector.multi_reduction <minimumf>, %49, %cst_26 [1, 2] : vector<1x8x128xf32> to vector<1xf32>
    %51 = vector.shape_cast %50 : vector<1xf32> to vector<1x1x1xf32>
    %52 = vector.extract %51[0, 0, 0] : f32 from vector<1x1x1xf32>
    %53 = arith.minimumf %24, %52 : f32
    %c0_27 = arith.constant 0 : index
    %c0_28 = arith.constant 0 : index
    %54 = vector.load %arg13[%c0_27, %c0_28] : memref<8x128xf32, #tpu.memory_space<vmem>>, vector<8x128xf32>
    tpu.vector_store %arg13[%c0_27, %c0_28], %44 {strides = array<i32>} : memref<8x128xf32, #tpu.memory_space<vmem>>, vector<8x128xf32>,
    %c0_29 = arith.constant 0 : index
    %c0_30 = arith.constant 0 : index
    %55 = vector.load %arg14[%c0_29, %c0_30] : memref<8x128xf32, #tpu.memory_space<vmem>>, vector<8x128xf32>
    tpu.vector_store %arg14[%c0_29, %c0_30], %47 {strides = array<i32>} : memref<8x128xf32, #tpu.memory_space<vmem>>, vector<8x128xf32>,
    %cst_31 = arith.constant 0.000000e+00 : f32
    %56 = vector.broadcast %cst_31 : f32 to vector<8x128xf32>
    %57 = arith.maximumf %44, %56 : vector<8x128xf32>
    %cst_32 = arith.constant 0.000000e+00 : f32
    %58 = vector.broadcast %cst_32 : f32 to vector<8x128xf32>
    %59 = arith.maximumf %47, %58 : vector<8x128xf32>
    %c0_33 = arith.constant 0 : index
    %c0_34 = arith.constant 0 : index
    %60 = vector.load %arg7[%c0_33, %c0_34] : memref<128x128xf32, #tpu.memory_space<vmem>>, vector<128x128xf32>
    %c0_35 = arith.constant 0 : index
    %c0_36 = arith.constant 0 : index
    %61 = vector.load %arg8[%c0_35, %c0_36] : memref<1x128xf32, #tpu.memory_space<vmem>>, vector<1x128xf32>
    %62 = math.absf %60 : vector<128x128xf32>
    %63 = arith.addf %57, %59 : vector<8x128xf32>
    %cst_37 = arith.constant 5.000000e-01 : f32
    %64 = vector.broadcast %cst_37 : f32 to vector<8x128xf32>
    %65 = arith.mulf %63, %64 : vector<8x128xf32>
    %66 = arith.subf %59, %57 : vector<8x128xf32>
    %cst_38 = arith.constant 5.000000e-01 : f32
    %67 = vector.broadcast %cst_38 : f32 to vector<8x128xf32>
    %68 = arith.mulf %66, %67 : vector<8x128xf32>
    %cst_39 = arith.constant dense<0.000000e+00> : vector<8x128xf32>
    %69 = tpu.matmul %65, %60, %cst_39 {dimension_numbers = #tpu.dot_dimension_numbers<[1], [0], [0], [1], [0, 0, 1, 1], [], []>} : vector<8x128xf32>, vector<128x128xf32>, vector<8x128xf32> -> vector<8x128xf32>
    %cst_40 = arith.constant dense<0.000000e+00> : vector<8x128xf32>
    %70 = tpu.matmul %68, %62, %cst_40 {dimension_numbers = #tpu.dot_dimension_numbers<[1], [0], [0], [1], [0, 0, 1, 1], [], []>} : vector<8x128xf32>, vector<128x128xf32>, vector<8x128xf32> -> vector<8x128xf32>
    %71 = arith.subf %69, %70 : vector<8x128xf32>
    %72 = vector.broadcast %61 : vector<1x128xf32> to vector<8x128xf32>
    %73 = arith.addf %71, %72 : vector<8x128xf32>
    %74 = arith.addf %69, %70 : vector<8x128xf32>
    %75 = vector.broadcast %61 : vector<1x128xf32> to vector<8x128xf32>
    %76 = arith.addf %74, %75 : vector<8x128xf32>
    %77 = arith.subf %76, %73 : vector<8x128xf32>
    %78 = vector.shape_cast %77 : vector<8x128xf32> to vector<1x8x128xf32>
    %cst_41 = arith.constant dense<0x7F800000> : vector<1xf32>
    %79 = vector.multi_reduction <minimumf>, %78, %cst_41 [1, 2] : vector<1x8x128xf32> to vector<1xf32>
    %80 = vector.shape_cast %79 : vector<1xf32> to vector<1x1x1xf32>
    %81 = vector.extract %80[0, 0, 0] : f32 from vector<1x1x1xf32>
    %82 = arith.minimumf %53, %81 : f32
    %c0_42 = arith.constant 0 : index
    %c0_43 = arith.constant 0 : index
    %83 = vector.load %arg9[%c0_42, %c0_43] : memref<8x128xf32, #tpu.memory_space<vmem>>, vector<8x128xf32>
    tpu.vector_store %arg9[%c0_42, %c0_43], %73 {strides = array<i32>} : memref<8x128xf32, #tpu.memory_space<vmem>>, vector<8x128xf32>,
    %c0_44 = arith.constant 0 : index
    %c0_45 = arith.constant 0 : index
    %84 = vector.load %arg10[%c0_44, %c0_45] : memref<8x128xf32, #tpu.memory_space<vmem>>, vector<8x128xf32>
    tpu.vector_store %arg10[%c0_44, %c0_45], %76 {strides = array<i32>} : memref<8x128xf32, #tpu.memory_space<vmem>>, vector<8x128xf32>,
    %85 = vector.broadcast %82 : f32 to vector<1x8x128xf32>
    %c0_46 = arith.constant 0 : index
    %c0_47 = arith.constant 0 : index
    %c0_48 = arith.constant 0 : index
    %86 = vector.load %arg15[%c0_46, %c0_47, %c0_48] : memref<1x8x128xf32, #tpu.memory_space<vmem>>, vector<1x8x128xf32>
    tpu.vector_store %arg15[%c0_46, %c0_47, %c0_48], %85 {strides = array<i32>} : memref<1x8x128xf32, #tpu.memory_space<vmem>>, vector<1x8x128xf32>,
    return
  }
  func.func @transform_0(%arg0: i32) -> (i32, i32) {
    %c0_i32 = arith.constant 0 : i32
    %c0_i32_0 = arith.constant 0 : i32
    return %arg0, %c0_i32 : i32, i32
  }
  func.func @transform_1(%arg0: i32) -> (i32, i32) {
    %c0_i32 = arith.constant 0 : i32
    %c0_i32_0 = arith.constant 0 : i32
    return %arg0, %c0_i32 : i32, i32
  }
  func.func @transform_2(%arg0: i32) -> (i32, i32) {
    %c0_i32 = arith.constant 0 : i32
    %c0_i32_0 = arith.constant 0 : i32
    %c0_i32_1 = arith.constant 0 : i32
    return %c0_i32, %c0_i32_0 : i32, i32
  }
  func.func @transform_3(%arg0: i32) -> (i32, i32) {
    %c0_i32 = arith.constant 0 : i32
    %c0_i32_0 = arith.constant 0 : i32
    %c0_i32_1 = arith.constant 0 : i32
    return %c0_i32, %c0_i32_0 : i32, i32
  }
  func.func @transform_4(%arg0: i32) -> (i32, i32) {
    %c0_i32 = arith.constant 0 : i32
    %c0_i32_0 = arith.constant 0 : i32
    %c0_i32_1 = arith.constant 0 : i32
    return %c0_i32, %c0_i32_0 : i32, i32
  }
  func.func @transform_5(%arg0: i32) -> (i32, i32) {
    %c0_i32 = arith.constant 0 : i32
    %c0_i32_0 = arith.constant 0 : i32
    %c0_i32_1 = arith.constant 0 : i32
    return %c0_i32, %c0_i32_0 : i32, i32
  }
  func.func @transform_6(%arg0: i32) -> (i32, i32) {
    %c0_i32 = arith.constant 0 : i32
    %c0_i32_0 = arith.constant 0 : i32
    %c0_i32_1 = arith.constant 0 : i32
    return %c0_i32, %c0_i32_0 : i32, i32
  }
  func.func @transform_7(%arg0: i32) -> (i32, i32) {
    %c0_i32 = arith.constant 0 : i32
    %c0_i32_0 = arith.constant 0 : i32
    %c0_i32_1 = arith.constant 0 : i32
    return %c0_i32, %c0_i32_0 : i32, i32
  }
  func.func @transform_8(%arg0: i32) -> (i32, i32) {
    %c0_i32 = arith.constant 0 : i32
    %c0_i32_0 = arith.constant 0 : i32
    return %arg0, %c0_i32 : i32, i32
  }
  func.func @transform_9(%arg0: i32) -> (i32, i32) {
    %c0_i32 = arith.constant 0 : i32
    %c0_i32_0 = arith.constant 0 : i32
    return %arg0, %c0_i32 : i32, i32
  }
  func.func @transform_10(%arg0: i32) -> (i32, i32) {
    %c0_i32 = arith.constant 0 : i32
    %c0_i32_0 = arith.constant 0 : i32
    return %arg0, %c0_i32 : i32, i32
  }
  func.func @transform_11(%arg0: i32) -> (i32, i32) {
    %c0_i32 = arith.constant 0 : i32
    %c0_i32_0 = arith.constant 0 : i32
    return %arg0, %c0_i32 : i32, i32
  }
  func.func @transform_12(%arg0: i32) -> (i32, i32) {
    %c0_i32 = arith.constant 0 : i32
    %c0_i32_0 = arith.constant 0 : i32
    return %arg0, %c0_i32 : i32, i32
  }
  func.func @transform_13(%arg0: i32) -> (i32, i32) {
    %c0_i32 = arith.constant 0 : i32
    %c0_i32_0 = arith.constant 0 : i32
    return %arg0, %c0_i32 : i32, i32
  }
  func.func @transform_14(%arg0: i32) -> (i32, i32, i32) {
    %c0_i32 = arith.constant 0 : i32
    %c0_i32_0 = arith.constant 0 : i32
    %c0_i32_1 = arith.constant 0 : i32
    return %arg0, %c0_i32, %c0_i32_0 : i32, i32, i32
  }
}

module attributes {stable_mosaic.version = 11 : i64} {
  func.func @kernel(%arg0: i32, %arg1: memref<8x32xf32, #tpu.memory_space<vmem>>, %arg2: memref<8x32xf32, #tpu.memory_space<vmem>>, %arg3: memref<32x128xf32, #tpu.memory_space<vmem>>, %arg4: memref<1x128xf32, #tpu.memory_space<vmem>>, %arg5: memref<128x128xf32, #tpu.memory_space<vmem>>, %arg6: memref<1x128xf32, #tpu.memory_space<vmem>>, %arg7: memref<128x128xf32, #tpu.memory_space<vmem>>, %arg8: memref<1x128xf32, #tpu.memory_space<vmem>>, %arg9: memref<8x128xf32, #tpu.memory_space<vmem>>, %arg10: memref<8x128xf32, #tpu.memory_space<vmem>>, %arg11: memref<8x128xf32, #tpu.memory_space<vmem>>, %arg12: memref<8x128xf32, #tpu.memory_space<vmem>>, %arg13: memref<8x128xf32, #tpu.memory_space<vmem>>, %arg14: memref<8x128xf32, #tpu.memory_space<vmem>>, %arg15: memref<1x8x128xf32, #tpu.memory_space<vmem>>) attributes {dimension_semantics = [#tpu.dimension_semantics<parallel>], iteration_bounds = array<i64: 1>, scalar_prefetch = 0 : i64, scratch_operands = 0 : i64, tpu.core_type = #tpu.core_type<tc>, window_params = [{transform_indices = @transform_0, window_bounds = array<i64: 8, 32>}, {transform_indices = @transform_1, window_bounds = array<i64: 8, 32>}, {pipeline_mode = #tpu.pipeline_mode<synchronous>, transform_indices = @transform_2, window_bounds = array<i64: 32, 128>}, {pipeline_mode = #tpu.pipeline_mode<synchronous>, transform_indices = @transform_3, window_bounds = array<i64: 1, 128>}, {pipeline_mode = #tpu.pipeline_mode<synchronous>, transform_indices = @transform_4, window_bounds = array<i64: 128, 128>}, {pipeline_mode = #tpu.pipeline_mode<synchronous>, transform_indices = @transform_5, window_bounds = array<i64: 1, 128>}, {pipeline_mode = #tpu.pipeline_mode<synchronous>, transform_indices = @transform_6, window_bounds = array<i64: 128, 128>}, {pipeline_mode = #tpu.pipeline_mode<synchronous>, transform_indices = @transform_7, window_bounds = array<i64: 1, 128>}, {transform_indices = @transform_8, window_bounds = array<i64: 8, 128>}, {transform_indices = @transform_9, window_bounds = array<i64: 8, 128>}, {transform_indices = @transform_10, window_bounds = array<i64: 8, 128>}, {transform_indices = @transform_11, window_bounds = array<i64: 8, 128>}, {transform_indices = @transform_12, window_bounds = array<i64: 8, 128>}, {transform_indices = @transform_13, window_bounds = array<i64: 8, 128>}, {transform_indices = @transform_14, window_bounds = array<i64: 1, 8, 128>}]} {
    %c0 = arith.constant 0 : index
    %c0_0 = arith.constant 0 : index
    %0 = vector.load %arg1[%c0, %c0_0] : memref<8x32xf32, #tpu.memory_space<vmem>>, vector<8x32xf32>
    %c0_1 = arith.constant 0 : index
    %c0_2 = arith.constant 0 : index
    %1 = vector.load %arg2[%c0_1, %c0_2] : memref<8x32xf32, #tpu.memory_space<vmem>>, vector<8x32xf32>
    %c0_3 = arith.constant 0 : index
    %c0_4 = arith.constant 0 : index
    %2 = vector.load %arg3[%c0_3, %c0_4] : memref<32x128xf32, #tpu.memory_space<vmem>>, vector<32x128xf32>
    %c0_5 = arith.constant 0 : index
    %c0_6 = arith.constant 0 : index
    %3 = vector.load %arg4[%c0_5, %c0_6] : memref<1x128xf32, #tpu.memory_space<vmem>>, vector<1x128xf32>
    %4 = math.absf %2 : vector<32x128xf32>
    %5 = arith.addf %0, %1 : vector<8x32xf32>
    %cst = arith.constant 5.000000e-01 : f32
    %6 = vector.broadcast %cst : f32 to vector<8x32xf32>
    %7 = arith.mulf %5, %6 : vector<8x32xf32>
    %8 = arith.subf %1, %0 : vector<8x32xf32>
    %cst_7 = arith.constant 5.000000e-01 : f32
    %9 = vector.broadcast %cst_7 : f32 to vector<8x32xf32>
    %10 = arith.mulf %8, %9 : vector<8x32xf32>
    %cst_8 = arith.constant dense<0.000000e+00> : vector<8x128xf32>
    %11 = tpu.matmul %7, %2, %cst_8 {dimension_numbers = #tpu.dot_dimension_numbers<[1], [0], [0], [1], [0, 0, 1, 1], [], []>} : vector<8x32xf32>, vector<32x128xf32>, vector<8x128xf32> -> vector<8x128xf32>
    %cst_9 = arith.constant dense<0.000000e+00> : vector<8x128xf32>
    %12 = tpu.matmul %10, %4, %cst_9 {dimension_numbers = #tpu.dot_dimension_numbers<[1], [0], [0], [1], [0, 0, 1, 1], [], []>} : vector<8x32xf32>, vector<32x128xf32>, vector<8x128xf32> -> vector<8x128xf32>
    %13 = arith.subf %11, %12 : vector<8x128xf32>
    %14 = vector.broadcast %3 : vector<1x128xf32> to vector<8x128xf32>
    %15 = arith.addf %13, %14 : vector<8x128xf32>
    %16 = arith.addf %11, %12 : vector<8x128xf32>
    %17 = vector.broadcast %3 : vector<1x128xf32> to vector<8x128xf32>
    %18 = arith.addf %16, %17 : vector<8x128xf32>
    %19 = arith.subf %18, %15 : vector<8x128xf32>
    %20 = vector.shape_cast %19 : vector<8x128xf32> to vector<1x8x128xf32>
    %cst_10 = arith.constant dense<0x7F800000> : vector<1xf32>
    %21 = vector.multi_reduction <minimumf>, %20, %cst_10 [1, 2] : vector<1x8x128xf32> to vector<1xf32>
    %22 = vector.shape_cast %21 : vector<1xf32> to vector<1x1x1xf32>
    %23 = vector.extract %22[0, 0, 0] : f32 from vector<1x1x1xf32>
    %cst_11 = arith.constant 0x7F800000 : f32
    %24 = arith.minimumf %cst_11, %23 : f32
    %c0_12 = arith.constant 0 : index
    %c0_13 = arith.constant 0 : index
    %25 = vector.load %arg11[%c0_12, %c0_13] : memref<8x128xf32, #tpu.memory_space<vmem>>, vector<8x128xf32>
    tpu.vector_store %arg11[%c0_12, %c0_13], %15 {strides = array<i32>} : memref<8x128xf32, #tpu.memory_space<vmem>>, vector<8x128xf32>,
    %c0_14 = arith.constant 0 : index
    %c0_15 = arith.constant 0 : index
    %26 = vector.load %arg12[%c0_14, %c0_15] : memref<8x128xf32, #tpu.memory_space<vmem>>, vector<8x128xf32>
    tpu.vector_store %arg12[%c0_14, %c0_15], %18 {strides = array<i32>} : memref<8x128xf32, #tpu.memory_space<vmem>>, vector<8x128xf32>,
    %cst_16 = arith.constant 0.000000e+00 : f32
    %27 = vector.broadcast %cst_16 : f32 to vector<8x128xf32>
    %28 = arith.maximumf %15, %27 : vector<8x128xf32>
    %cst_17 = arith.constant 0.000000e+00 : f32
    %29 = vector.broadcast %cst_17 : f32 to vector<8x128xf32>
    %30 = arith.maximumf %18, %29 : vector<8x128xf32>
    %c0_18 = arith.constant 0 : index
    %c0_19 = arith.constant 0 : index
    %31 = vector.load %arg5[%c0_18, %c0_19] : memref<128x128xf32, #tpu.memory_space<vmem>>, vector<128x128xf32>
    %c0_20 = arith.constant 0 : index
    %c0_21 = arith.constant 0 : index
    %32 = vector.load %arg6[%c0_20, %c0_21] : memref<1x128xf32, #tpu.memory_space<vmem>>, vector<1x128xf32>
    %33 = math.absf %31 : vector<128x128xf32>
    %34 = arith.addf %28, %30 : vector<8x128xf32>
    %cst_22 = arith.constant 5.000000e-01 : f32
    %35 = vector.broadcast %cst_22 : f32 to vector<8x128xf32>
    %36 = arith.mulf %34, %35 : vector<8x128xf32>
    %37 = arith.subf %30, %28 : vector<8x128xf32>
    %cst_23 = arith.constant 5.000000e-01 : f32
    %38 = vector.broadcast %cst_23 : f32 to vector<8x128xf32>
    %39 = arith.mulf %37, %38 : vector<8x128xf32>
    %cst_24 = arith.constant dense<0.000000e+00> : vector<8x128xf32>
    %40 = tpu.matmul %36, %31, %cst_24 {dimension_numbers = #tpu.dot_dimension_numbers<[1], [0], [0], [1], [0, 0, 1, 1], [], []>} : vector<8x128xf32>, vector<128x128xf32>, vector<8x128xf32> -> vector<8x128xf32>
    %cst_25 = arith.constant dense<0.000000e+00> : vector<8x128xf32>
    %41 = tpu.matmul %39, %33, %cst_25 {dimension_numbers = #tpu.dot_dimension_numbers<[1], [0], [0], [1], [0, 0, 1, 1], [], []>} : vector<8x128xf32>, vector<128x128xf32>, vector<8x128xf32> -> vector<8x128xf32>
    %42 = arith.subf %40, %41 : vector<8x128xf32>
    %43 = vector.broadcast %32 : vector<1x128xf32> to vector<8x128xf32>
    %44 = arith.addf %42, %43 : vector<8x128xf32>
    %45 = arith.addf %40, %41 : vector<8x128xf32>
    %46 = vector.broadcast %32 : vector<1x128xf32> to vector<8x128xf32>
    %47 = arith.addf %45, %46 : vector<8x128xf32>
    %48 = arith.subf %47, %44 : vector<8x128xf32>
    %49 = vector.shape_cast %48 : vector<8x128xf32> to vector<1x8x128xf32>
    %cst_26 = arith.constant dense<0x7F800000> : vector<1xf32>
    %50 = vector.multi_reduction <minimumf>, %49, %cst_26 [1, 2] : vector<1x8x128xf32> to vector<1xf32>
    %51 = vector.shape_cast %50 : vector<1xf32> to vector<1x1x1xf32>
    %52 = vector.extract %51[0, 0, 0] : f32 from vector<1x1x1xf32>
    %53 = arith.minimumf %24, %52 : f32
    %c0_27 = arith.constant 0 : index
    %c0_28 = arith.constant 0 : index
    %54 = vector.load %arg13[%c0_27, %c0_28] : memref<8x128xf32, #tpu.memory_space<vmem>>, vector<8x128xf32>
    tpu.vector_store %arg13[%c0_27, %c0_28], %44 {strides = array<i32>} : memref<8x128xf32, #tpu.memory_space<vmem>>, vector<8x128xf32>,
    %c0_29 = arith.constant 0 : index
    %c0_30 = arith.constant 0 : index
    %55 = vector.load %arg14[%c0_29, %c0_30] : memref<8x128xf32, #tpu.memory_space<vmem>>, vector<8x128xf32>
    tpu.vector_store %arg14[%c0_29, %c0_30], %47 {strides = array<i32>} : memref<8x128xf32, #tpu.memory_space<vmem>>, vector<8x128xf32>,
    %cst_31 = arith.constant 0.000000e+00 : f32
    %56 = vector.broadcast %cst_31 : f32 to vector<8x128xf32>
    %57 = arith.maximumf %44, %56 : vector<8x128xf32>
    %cst_32 = arith.constant 0.000000e+00 : f32
    %58 = vector.broadcast %cst_32 : f32 to vector<8x128xf32>
    %59 = arith.maximumf %47, %58 : vector<8x128xf32>
    %c0_33 = arith.constant 0 : index
    %c0_34 = arith.constant 0 : index
    %60 = vector.load %arg7[%c0_33, %c0_34] : memref<128x128xf32, #tpu.memory_space<vmem>>, vector<128x128xf32>
    %c0_35 = arith.constant 0 : index
    %c0_36 = arith.constant 0 : index
    %61 = vector.load %arg8[%c0_35, %c0_36] : memref<1x128xf32, #tpu.memory_space<vmem>>, vector<1x128xf32>
    %62 = math.absf %60 : vector<128x128xf32>
    %63 = arith.addf %57, %59 : vector<8x128xf32>
    %cst_37 = arith.constant 5.000000e-01 : f32
    %64 = vector.broadcast %cst_37 : f32 to vector<8x128xf32>
    %65 = arith.mulf %63, %64 : vector<8x128xf32>
    %66 = arith.subf %59, %57 : vector<8x128xf32>
    %cst_38 = arith.constant 5.000000e-01 : f32
    %67 = vector.broadcast %cst_38 : f32 to vector<8x128xf32>
    %68 = arith.mulf %66, %67 : vector<8x128xf32>
    %cst_39 = arith.constant dense<0.000000e+00> : vector<8x128xf32>
    %69 = tpu.matmul %65, %60, %cst_39 {dimension_numbers = #tpu.dot_dimension_numbers<[1], [0], [0], [1], [0, 0, 1, 1], [], []>} : vector<8x128xf32>, vector<128x128xf32>, vector<8x128xf32> -> vector<8x128xf32>
    %cst_40 = arith.constant dense<0.000000e+00> : vector<8x128xf32>
    %70 = tpu.matmul %68, %62, %cst_40 {dimension_numbers = #tpu.dot_dimension_numbers<[1], [0], [0], [1], [0, 0, 1, 1], [], []>} : vector<8x128xf32>, vector<128x128xf32>, vector<8x128xf32> -> vector<8x128xf32>
    %71 = arith.subf %69, %70 : vector<8x128xf32>
    %72 = vector.broadcast %61 : vector<1x128xf32> to vector<8x128xf32>
    %73 = arith.addf %71, %72 : vector<8x128xf32>
    %74 = arith.addf %69, %70 : vector<8x128xf32>
    %75 = vector.broadcast %61 : vector<1x128xf32> to vector<8x128xf32>
    %76 = arith.addf %74, %75 : vector<8x128xf32>
    %77 = arith.subf %76, %73 : vector<8x128xf32>
    %78 = vector.shape_cast %77 : vector<8x128xf32> to vector<1x8x128xf32>
    %cst_41 = arith.constant dense<0x7F800000> : vector<1xf32>
    %79 = vector.multi_reduction <minimumf>, %78, %cst_41 [1, 2] : vector<1x8x128xf32> to vector<1xf32>
    %80 = vector.shape_cast %79 : vector<1xf32> to vector<1x1x1xf32>
    %81 = vector.extract %80[0, 0, 0] : f32 from vector<1x1x1xf32>
    %82 = arith.minimumf %53, %81 : f32
    %c0_42 = arith.constant 0 : index
    %c0_43 = arith.constant 0 : index
    %83 = vector.load %arg9[%c0_42, %c0_43] : memref<8x128xf32, #tpu.memory_space<vmem>>, vector<8x128xf32>
    tpu.vector_store %arg9[%c0_42, %c0_43], %73 {strides = array<i32>} : memref<8x128xf32, #tpu.memory_space<vmem>>, vector<8x128xf32>,
    %c0_44 = arith.constant 0 : index
    %c0_45 = arith.constant 0 : index
    %84 = vector.load %arg10[%c0_44, %c0_45] : memref<8x128xf32, #tpu.memory_space<vmem>>, vector<8x128xf32>
    tpu.vector_store %arg10[%c0_44, %c0_45], %76 {strides = array<i32>} : memref<8x128xf32, #tpu.memory_space<vmem>>, vector<8x128xf32>,
    %85 = vector.broadcast %82 : f32 to vector<1x8x128xf32>
    %c0_46 = arith.constant 0 : index
    %c0_47 = arith.constant 0 : index
    %c0_48 = arith.constant 0 : index
    %86 = vector.load %arg15[%c0_46, %c0_47, %c0_48] : memref<1x8x128xf32, #tpu.memory_space<vmem>>, vector<1x8x128xf32>
    tpu.vector_store %arg15[%c0_46, %c0_47, %c0_48], %85 {strides = array<i32>} : memref<1x8x128xf32, #tpu.memory_space<vmem>>, vector<1x8x128xf32>,
    return
  }
  func.func @transform_0(%arg0: i32) -> (i32, i32) {
    %c0_i32 = arith.constant 0 : i32
    %c0_i32_0 = arith.constant 0 : i32
    return %arg0, %c0_i32 : i32, i32
  }
  func.func @transform_1(%arg0: i32) -> (i32, i32) {
    %c0_i32 = arith.constant 0 : i32
    %c0_i32_0 = arith.constant 0 : i32
    return %arg0, %c0_i32 : i32, i32
  }
  func.func @transform_2(%arg0: i32) -> (i32, i32) {
    %c0_i32 = arith.constant 0 : i32
    %c0_i32_0 = arith.constant 0 : i32
    %c0_i32_1 = arith.constant 0 : i32
    return %c0_i32, %c0_i32_0 : i32, i32
  }
  func.func @transform_3(%arg0: i32) -> (i32, i32) {
    %c0_i32 = arith.constant 0 : i32
    %c0_i32_0 = arith.constant 0 : i32
    %c0_i32_1 = arith.constant 0 : i32
    return %c0_i32, %c0_i32_0 : i32, i32
  }
  func.func @transform_4(%arg0: i32) -> (i32, i32) {
    %c0_i32 = arith.constant 0 : i32
    %c0_i32_0 = arith.constant 0 : i32
    %c0_i32_1 = arith.constant 0 : i32
    return %c0_i32, %c0_i32_0 : i32, i32
  }
  func.func @transform_5(%arg0: i32) -> (i32, i32) {
    %c0_i32 = arith.constant 0 : i32
    %c0_i32_0 = arith.constant 0 : i32
    %c0_i32_1 = arith.constant 0 : i32
    return %c0_i32, %c0_i32_0 : i32, i32
  }
  func.func @transform_6(%arg0: i32) -> (i32, i32) {
    %c0_i32 = arith.constant 0 : i32
    %c0_i32_0 = arith.constant 0 : i32
    %c0_i32_1 = arith.constant 0 : i32
    return %c0_i32, %c0_i32_0 : i32, i32
  }
  func.func @transform_7(%arg0: i32) -> (i32, i32) {
    %c0_i32 = arith.constant 0 : i32
    %c0_i32_0 = arith.constant 0 : i32
    %c0_i32_1 = arith.constant 0 : i32
    return %c0_i32, %c0_i32_0 : i32, i32
  }
  func.func @transform_8(%arg0: i32) -> (i32, i32) {
    %c0_i32 = arith.constant 0 : i32
    %c0_i32_0 = arith.constant 0 : i32
    return %arg0, %c0_i32 : i32, i32
  }
  func.func @transform_9(%arg0: i32) -> (i32, i32) {
    %c0_i32 = arith.constant 0 : i32
    %c0_i32_0 = arith.constant 0 : i32
    return %arg0, %c0_i32 : i32, i32
  }
  func.func @transform_10(%arg0: i32) -> (i32, i32) {
    %c0_i32 = arith.constant 0 : i32
    %c0_i32_0 = arith.constant 0 : i32
    return %arg0, %c0_i32 : i32, i32
  }
  func.func @transform_11(%arg0: i32) -> (i32, i32) {
    %c0_i32 = arith.constant 0 : i32
    %c0_i32_0 = arith.constant 0 : i32
    return %arg0, %c0_i32 : i32, i32
  }
  func.func @transform_12(%arg0: i32) -> (i32, i32) {
    %c0_i32 = arith.constant 0 : i32
    %c0_i32_0 = arith.constant 0 : i32
    return %arg0, %c0_i32 : i32, i32
  }
  func.func @transform_13(%arg0: i32) -> (i32, i32) {
    %c0_i32 = arith.constant 0 : i32
    %c0_i32_0 = arith.constant 0 : i32
    return %arg0, %c0_i32 : i32, i32
  }
  func.func @transform_14(%arg0: i32) -> (i32, i32, i32) {
    %c0_i32 = arith.constant 0 : i32
    %c0_i32_0 = arith.constant 0 : i32
    %c0_i32_1 = arith.constant 0 : i32
    return %arg0, %c0_i32, %c0_i32_0 : i32, i32, i32
  }
}

</mosaic_0001>

<llo_original>
// kernel: _fwd_impl.1
$region0: #{_fwd_impl.1}
  #allocation0 [shape = 'u32[]', space=smem, size = 0x4, offset = 0x4, fixed_abs, tag = 'smem constant byte address 0x4 - core index']
  #allocation1 [shape = 'u32[144,128]{1,0:T(1,128)}', space=vmem, size = 0x12000, scoped, tag = 'internal scratch']
  %s0 = inlined_call_operand.hbm [shape: f32[8,32], index: 0, kind: input, shape index: {}]
  %s1 = inlined_call_operand.hbm [shape: f32[8,32], index: 1, kind: input, shape index: {}]
  %s2 = inlined_call_operand.hbm [shape: f32[32,128], index: 2, kind: input, shape index: {}]
  %s3 = inlined_call_operand.vmem [shape: f32[1,128], index: 3, kind: input, shape index: {}]
  %s4 = inlined_call_operand.hbm [shape: f32[128,128], index: 4, kind: input, shape index: {}]
  %s5 = inlined_call_operand.vmem [shape: f32[1,128], index: 5, kind: input, shape index: {}]
  %s6 = inlined_call_operand.hbm [shape: f32[128,128], index: 6, kind: input, shape index: {}]
  %s7 = inlined_call_operand.vmem [shape: f32[1,128], index: 7, kind: input, shape index: {}]
  %s8 = inlined_call_operand.vmem [shape: f32[8,128], index: 8, kind: output, shape index: {0}]
  %s9 = inlined_call_operand.vmem [shape: f32[8,128], index: 9, kind: output, shape index: {1}]
  %s10 = inlined_call_operand.vmem [shape: f32[8,128], index: 10, kind: output, shape index: {2}]
  %s11 = inlined_call_operand.vmem [shape: f32[8,128], index: 11, kind: output, shape index: {3}]
  %s12 = inlined_call_operand.vmem [shape: f32[8,128], index: 12, kind: output, shape index: {4}]
  %s13 = inlined_call_operand.vmem [shape: f32[8,128], index: 13, kind: output, shape index: {5}]
  %s14 = inlined_call_operand.vmem [shape: f32[1,8,128], index: 14, kind: output, shape index: {6}]
  %15 = xla_tuple %s8, %s9, %s10, %s11, %s12, %s13, %s14
  %s16 = sld [smem:[#allocation0]]
  $region110: #{_fwd_impl.1} parent=0
    _
  %s18 = ssub.s32 1, %s16
  %s19 = scalar_select 0, %s18, %s16
  $region1: #{_fwd_impl.1} parent=0
    #allocation2 [shape = 'u8[4096]{0}', space=vmem, size = 0x1000, scoped, tag = 'input window, operand 0, single buffered']
    #allocation3 [shape = 's32[1]{0}', space=sflag, size = 0x4, scoped, tag = 'scoped memory for _fwd_impl.1']
    #allocation4 [shape = 'u8[4096]{0}', space=vmem, size = 0x1000, scoped, tag = 'input window, operand 1, single buffered']
    #allocation5 [shape = 's32[1]{0}', space=sflag, size = 0x4, scoped, tag = 'scoped memory for _fwd_impl.1']
    #allocation6 [shape = 'u8[16384]{0}', space=vmem, size = 0x4000, scoped, tag = 'input window, operand 2, single buffered']
    #allocation7 [shape = 'u8[65536]{0}', space=vmem, size = 0x10000, scoped, tag = 'input window, operand 4, single buffered']
    #allocation8 [shape = 's32[1]{0}', space=sflag, size = 0x4, scoped, tag = 'scoped memory for _fwd_impl.1']
    #allocation9 [shape = 'u8[65536]{0}', space=vmem, size = 0x10000, scoped, tag = 'input window, operand 6, single buffered']
    %20 = vsyncpa [#allocation3], 0
    %21 = vsyncpa [#allocation5], 0
    %22 = vsyncpa [#allocation8], 0
    // Predicated region
    $region2: #{_fwd_impl.1} parent=1 // pred_check
      _
    $region3: #{_fwd_impl.1} parent=1 // pred_check_branch
      %24 = sbr.rel (0) target = $region5
    $region4: #{_fwd_impl.1} parent=1 // pred_region
      %s26 = ssub.s32 128, 128
      %27 = vsyncadd [#allocation3], %s26
      %s29 = sshll.u32 [#allocation2], 4
      %s30 = int_to_ptr.vmem [resolvable:$true] %s29
      %32 = dma.hbm_to_vmem [thread:$0]  %s0, 128, %s30, [#allocation3]
    $region5: #{_fwd_impl.1} parent=1 // pred_fallthru
      _
    // Predicated region
    $region6: #{_fwd_impl.1} parent=1 // pred_check
      _
    $region7: #{_fwd_impl.1} parent=1 // pred_check_branch
      %34 = sbr.rel (0) target = $region9
    $region8: #{_fwd_impl.1} parent=1 // pred_region
      %s36 = ssub.s32 128, 128
      %37 = vsyncadd [#allocation5], %s36
      %s39 = sshll.u32 [#allocation4], 4
      %s40 = int_to_ptr.vmem [resolvable:$true] %s39
      %42 = dma.hbm_to_vmem [thread:$0]  %s1, 128, %s40, [#allocation5]
    $region9: #{_fwd_impl.1} parent=1 // pred_fallthru
      _
    // Predicated region
    $region10: #{_fwd_impl.1} parent=1 // pred_check
      _
    $region11: #{_fwd_impl.1} parent=1 // pred_check_branch
      %44 = sbr.rel (0) target = $region13
    $region12: #{_fwd_impl.1} parent=1 // pred_region
      %s46 = ssub.s32 512, 512
      %47 = vsyncadd [#allocation5], %s46
      %s48 = sshll.u32 [#allocation6], 4
      %s49 = int_to_ptr.vmem [resolvable:$true] %s48
      %54 = dma.hbm_to_vmem [thread:$0]  %s2, 512, %s49, [#allocation5], 128, 128, 8
    $region13: #{_fwd_impl.1} parent=1 // pred_fallthru
      _
    // Predicated region
    $region14: #{_fwd_impl.1} parent=1 // pred_check
      _
    $region15: #{_fwd_impl.1} parent=1 // pred_check_branch
      %56 = sbr.rel (0) target = $region17
    $region16: #{_fwd_impl.1} parent=1 // pred_region
      _
    $region17: #{_fwd_impl.1} parent=1 // pred_fallthru
      _
    // Predicated region
    $region18: #{_fwd_impl.1} parent=1 // pred_check
      _
    $region19: #{_fwd_impl.1} parent=1 // pred_check_branch
      %58 = sbr.rel (0) target = $region21
    $region20: #{_fwd_impl.1} parent=1 // pred_region
      %s60 = ssub.s32 2048, 2048
      %61 = vsyncadd [#allocation8], %s60
      %s62 = sshll.u32 [#allocation7], 4
      %s63 = int_to_ptr.vmem [resolvable:$true] %s62
      %68 = dma.hbm_to_vmem [thread:$0]  %s4, 2048, %s63, [#allocation8], 128, 128, 8
    $region21: #{_fwd_impl.1} parent=1 // pred_fallthru
      _
    // Predicated region
    $region22: #{_fwd_impl.1} parent=1 // pred_check
      _
    $region23: #{_fwd_impl.1} parent=1 // pred_check_branch
      %70 = sbr.rel (0) target = $region25
    $region24: #{_fwd_impl.1} parent=1 // pred_region
      _
    $region25: #{_fwd_impl.1} parent=1 // pred_fallthru
      _
    // Predicated region
    $region26: #{_fwd_impl.1} parent=1 // pred_check
      _
    $region27: #{_fwd_impl.1} parent=1 // pred_check_branch
      %72 = sbr.rel (0) target = $region29
    $region28: #{_fwd_impl.1} parent=1 // pred_region
      %s74 = ssub.s32 2048, 2048
      %75 = vsyncadd [#allocation8], %s74
      %s76 = sshll.u32 [#allocation9], 4
      %s77 = int_to_ptr.vmem [resolvable:$true] %s76
      %82 = dma.hbm_to_vmem [thread:$0]  %s6, 2048, %s77, [#allocation8], 128, 128, 8
    $region29: #{_fwd_impl.1} parent=1 // pred_fallthru
      _
    // Predicated region
    $region30: #{_fwd_impl.1} parent=1 // pred_check
      _
    $region31: #{_fwd_impl.1} parent=1 // pred_check_branch
      %84 = sbr.rel (0) target = $region33
    $region32: #{_fwd_impl.1} parent=1 // pred_region
      _
    $region33: #{_fwd_impl.1} parent=1 // pred_fallthru
      _
    // Predicated region
    $region34: #{_fwd_impl.1} parent=1 // pred_check
      _
    $region35: #{_fwd_impl.1} parent=1 // pred_check_branch
      %86 = sbr.rel (0) target = $region37
    $region36: #{_fwd_impl.1} parent=1 // pred_region
      %87 = dma.done [#allocation3], 128
    $region37: #{_fwd_impl.1} parent=1 // pred_fallthru
      _
    // Predicated region
    $region38: #{_fwd_impl.1} parent=1 // pred_check
      _
    $region39: #{_fwd_impl.1} parent=1 // pred_check_branch
      %89 = sbr.rel (0) target = $region41
    $region40: #{_fwd_impl.1} parent=1 // pred_region
      %90 = dma.done [#allocation5], 128
    $region41: #{_fwd_impl.1} parent=1 // pred_fallthru
      _
    // Predicated region
    $region42: #{_fwd_impl.1} parent=1 // pred_check
      _
    $region43: #{_fwd_impl.1} parent=1 // pred_check_branch
      %92 = sbr.rel (0) target = $region45
    $region44: #{_fwd_impl.1} parent=1 // pred_region
      %93 = dma.done [#allocation5], 512
    $region45: #{_fwd_impl.1} parent=1 // pred_fallthru
      _
    // Predicated region
    $region46: #{_fwd_impl.1} parent=1 // pred_check
      _
    $region47: #{_fwd_impl.1} parent=1 // pred_check_branch
      %95 = sbr.rel (0) target = $region49
    $region48: #{_fwd_impl.1} parent=1 // pred_region
      %96 = dma.done [#allocation8], 2048
    $region49: #{_fwd_impl.1} parent=1 // pred_fallthru
      _
    // Predicated region
    $region50: #{_fwd_impl.1} parent=1 // pred_check
      _
    $region51: #{_fwd_impl.1} parent=1 // pred_check_branch
      %98 = sbr.rel (0) target = $region53
    $region52: #{_fwd_impl.1} parent=1 // pred_region
      %99 = dma.done [#allocation8], 2048
    $region53: #{_fwd_impl.1} parent=1 // pred_fallthru
      _
    %v100 = vld [vmem:[#allocation2] sm:$0xff]
    %v101 = vld [vmem:[#allocation4] sm:$0xff]
    %v102 = vld [vmem:[#allocation6] sm:$0xff]
    %v103 = vld [vmem:[#allocation6 + $0x8] sm:$0xff]
    %v104 = vld [vmem:[#allocation6 + $0x10] sm:$0xff]
    %v105 = vld [vmem:[#allocation6 + $0x18] sm:$0xff]
    %v106 = vld [vmem:[%s3] sm:$0x1]
    %v107 = vand.u32 2147483647, %v102
    %v108 = vand.u32 2147483647, %v103
    %v109 = vand.u32 2147483647, %v104
    %v110 = vand.u32 2147483647, %v105
    %v111 = vadd.f32 %v100, %v101
    %v112 = vmul.f32 %v111, 0.5
    %v113 = vsub.f32 %v101, %v100
    %v114 = vmul.f32 %v113, 0.5
    %vm115 = vcmask 261120
    %v117 = vsel %vm115, %v112, 0
    %119 = vmatprep.subr.mxu0 0.0
    %120 = vmatpush1.msra.mxu0 %v102
    %121 = vmatprep.subr.mxu0 0.0
    %122 = vmatpush1.msra.mxu0 %v103
    %123 = vmatprep.subr.mxu0 0.0
    %124 = vmatpush1.msra.mxu0 %v104
    %125 = vmatprep.subr.mxu0 0.0
    %126 = vmatpush1.msra.mxu0 %v105
    %127 = vmatprep.subr.mxu0 0.0
    %128 = vmatpush1.msra.mxu0 0.0
    %129 = vmatprep.subr.mxu0 0.0
    %130 = vmatpush1.msra.mxu0 0.0
    %131 = vmatprep.subr.mxu0 0.0
    %132 = vmatpush1.msra.mxu0 0.0
    %133 = vmatprep.subr.mxu0 0.0
    %134 = vmatpush1.msra.mxu0 0.0
    %135 = vmatprep.subr.mxu0 0.0
    %136 = vmatpush1.msra.mxu0 0.0
    %137 = vmatprep.subr.mxu0 0.0
    %138 = vmatpush1.msra.mxu0 0.0
    %139 = vmatprep.subr.mxu0 0.0
    %140 = vmatpush1.msra.mxu0 0.0
    %141 = vmatprep.subr.mxu0 0.0
    %142 = vmatpush1.msra.mxu0 0.0
    %143 = vmatprep.subr.mxu0 0.0
    %144 = vmatpush1.msra.mxu0 0.0
    %145 = vmatprep.subr.mxu0 0.0
    %146 = vmatpush1.msra.mxu0 0.0
    %147 = vmatprep.subr.mxu0 0.0
    %148 = vmatpush1.msra.mxu0 0.0
    %149 = vmatprep.subr.mxu0 0.0
    %150 = vmatpush1.msra.mxu0 0.0
    %151 = vmatprep.subr.mxu0 0.0
    %152 = vmatpush1.msra.mxu0 0.0
    %153 = vmatprep.subr.mxu0 0.0
    %154 = vmatpush1.msra.mxu0 0.0
    %155 = vmatprep.subr.mxu0 0.0
    %156 = vmatpush1.msra.mxu0 0.0
    %157 = vmatprep.subr.mxu0 0.0
    %158 = vmatpush1.msra.mxu0 0.0
    %159 = vmatprep.subr.mxu0 0.0
    %160 = vmatpush1.msra.mxu0 0.0
    %161 = vmatprep.subr.mxu0 0.0
    %162 = vmatpush1.msra.mxu0 0.0
    %163 = vmatprep.subr.mxu0 0.0
    %164 = vmatpush1.msra.mxu0 0.0
    %165 = vmatprep.subr.mxu0 0.0
    %166 = vmatpush1.msra.mxu0 0.0
    %167 = vmatprep.subr.mxu0 0.0
    %168 = vmatpush1.msra.mxu0 0.0
    %169 = vmatprep.subr.mxu0 0.0
    %170 = vmatpush1.msra.mxu0 0.0
    %171 = vmatprep.subr.mxu0 0.0
    %172 = vmatpush1.msra.mxu0 0.0
    %173 = vmatprep.subr.mxu0 0.0
    %174 = vmatpush1.msra.mxu0 0.0
    %175 = vmatprep.subr.mxu0 0.0
    %176 = vmatpush1.msra.mxu0 0.0
    %177 = vmatprep.subr.mxu0 0.0
    %178 = vmatpush1.msra.mxu0 0.0
    %179 = vmatprep.subr.mxu0 0.0
    %180 = vmatpush1.msra.mxu0 0.0
    %181 = vmatprep.subr.mxu0 0.0
    %182 = vmatpush1.msra.mxu0 0.0
    %183 = vmatprep.mubr.f32.mxu0 0.0
    %184 = vmatmul.mubr.f32.gmra.mrb[0].mxu0 %v117
    %v185 = vpop.f32.mrb[0].mxu0
    %v186 = vadd.f32 0.0, %v185
    %v187 = vpop.f32.mrb[0].mxu0
    %188 = vdwg.mxu0
    %v190 = vsel %vm115, %v114, 0
    %192 = vmatprep.subr.mxu0 0.0
    %193 = vmatpush1.msra.mxu0 %v107
    %194 = vmatprep.subr.mxu0 0.0
    %195 = vmatpush1.msra.mxu0 %v108
    %196 = vmatprep.subr.mxu0 0.0
    %197 = vmatpush1.msra.mxu0 %v109
    %198 = vmatprep.subr.mxu0 0.0
    %199 = vmatpush1.msra.mxu0 %v110
    %200 = vmatprep.subr.mxu0 0.0
    %201 = vmatpush1.msra.mxu0 0.0
    %202 = vmatprep.subr.mxu0 0.0
    %203 = vmatpush1.msra.mxu0 0.0
    %204 = vmatprep.subr.mxu0 0.0
    %205 = vmatpush1.msra.mxu0 0.0
    %206 = vmatprep.subr.mxu0 0.0
    %207 = vmatpush1.msra.mxu0 0.0
    %208 = vmatprep.subr.mxu0 0.0
    %209 = vmatpush1.msra.mxu0 0.0
    %210 = vmatprep.subr.mxu0 0.0
    %211 = vmatpush1.msra.mxu0 0.0
    %212 = vmatprep.subr.mxu0 0.0
    %213 = vmatpush1.msra.mxu0 0.0
    %214 = vmatprep.subr.mxu0 0.0
    %215 = vmatpush1.msra.mxu0 0.0
    %216 = vmatprep.subr.mxu0 0.0
    %217 = vmatpush1.msra.mxu0 0.0
    %218 = vmatprep.subr.mxu0 0.0
    %219 = vmatpush1.msra.mxu0 0.0
    %220 = vmatprep.subr.mxu0 0.0
    %221 = vmatpush1.msra.mxu0 0.0
    %222 = vmatprep.subr.mxu0 0.0
    %223 = vmatpush1.msra.mxu0 0.0
    %224 = vmatprep.subr.mxu0 0.0
    %225 = vmatpush1.msra.mxu0 0.0
    %226 = vmatprep.subr.mxu0 0.0
    %227 = vmatpush1.msra.mxu0 0.0
    %228 = vmatprep.subr.mxu0 0.0
    %229 = vmatpush1.msra.mxu0 0.0
    %230 = vmatprep.subr.mxu0 0.0
    %231 = vmatpush1.msra.mxu0 0.0
    %232 = vmatprep.subr.mxu0 0.0
    %233 = vmatpush1.msra.mxu0 0.0
    %234 = vmatprep.subr.mxu0 0.0
    %235 = vmatpush1.msra.mxu0 0.0
    %236 = vmatprep.subr.mxu0 0.0
    %237 = vmatpush1.msra.mxu0 0.0
    %238 = vmatprep.subr.mxu0 0.0
    %239 = vmatpush1.msra.mxu0 0.0
    %240 = vmatprep.subr.mxu0 0.0
    %241 = vmatpush1.msra.mxu0 0.0
    %242 = vmatprep.subr.mxu0 0.0
    %243 = vmatpush1.msra.mxu0 0.0
    %244 = vmatprep.subr.mxu0 0.0
    %245 = vmatpush1.msra.mxu0 0.0
    %246 = vmatprep.subr.mxu0 0.0
    %247 = vmatpush1.msra.mxu0 0.0
    %248 = vmatprep.subr.mxu0 0.0
    %249 = vmatpush1.msra.mxu0 0.0
    %250 = vmatprep.subr.mxu0 0.0
    %251 = vmatpush1.msra.mxu0 0.0
    %252 = vmatprep.subr.mxu0 0.0
    %253 = vmatpush1.msra.mxu0 0.0
    %254 = vmatprep.subr.mxu0 0.0
    %255 = vmatpush1.msra.mxu0 0.0
    %256 = vmatprep.mubr.f32.mxu0 0.0
    %257 = vmatmul.mubr.f32.gmra.mrb[0].mxu0 %v190
    %v258 = vpop.f32.mrb[0].mxu0
    %v259 = vadd.f32 0.0, %v258
    %v260 = vpop.f32.mrb[0].mxu0
    %261 = vdwg.mxu0
    %v262 = vsub.f32 %v186, %v259
    %v264 = vlaneseq
    %v265 = vshrl.u32 %v264, 7
    %v266 = vsub.s32 0, %v265
    %v267 = vrot.slane %v106, %v266
    %v269 = vadd.f32 %v262, %v267
    %v270 = vadd.f32 %v186, %v259
    %v271 = vadd.f32 %v270, %v267
    %v272 = vsub.f32 %v271, %v269
    %273 = vmin.xlane.f32.xlu0 %v272
    %v274 = vpop.xlane.xlu0 %273
    %v275 = vrot.slane %v274, 4
    %v276 = vmin.f32 %v274, %v275
    %v277 = vrot.slane %v276, 2
    %v278 = vmin.f32 %v276, %v277
    %v279 = vrot.slane %v278, 1
    %v280 = vmin.f32 %v278, %v279
    %s281 = vtos %v280
    %282 = vst [vmem:[%s10] sm:$0xff] %v269
    %283 = vst [vmem:[%s11] sm:$0xff] %v271
    %v284 = vmax.f32 %v269, 0.0
    %v285 = vmax.f32 %v271, 0.0
    %v286 = vld [vmem:[#allocation7] sm:$0xff]
    %v287 = vld [vmem:[#allocation7 + $0x8] sm:$0xff]
    %v288 = vld [vmem:[#allocation7 + $0x10] sm:$0xff]
    %v289 = vld [vmem:[#allocation7 + $0x18] sm:$0xff]
    %v290 = vld [vmem:[#allocation7 + $0x20] sm:$0xff]
    %v291 = vld [vmem:[#allocation7 + $0x28] sm:$0xff]
    %v292 = vld [vmem:[#allocation7 + $0x30] sm:$0xff]
    %v293 = vld [vmem:[#allocation7 + $0x38] sm:$0xff]
    %v294 = vld [vmem:[#allocation7 + $0x40] sm:$0xff]
    %v295 = vld [vmem:[#allocation7 + $0x48] sm:$0xff]
    %v296 = vld [vmem:[#allocation7 + $0x50] sm:$0xff]
    %v297 = vld [vmem:[#allocation7 + $0x58] sm:$0xff]
    %v298 = vld [vmem:[#allocation7 + $0x60] sm:$0xff]
    %v299 = vld [vmem:[#allocation7 + $0x68] sm:$0xff]
    %v300 = vld [vmem:[#allocation7 + $0x70] sm:$0xff]
    %v301 = vld [vmem:[#allocation7 + $0x78] sm:$0xff]
    %v302 = vld [vmem:[%s5] sm:$0x1]
    %v303 = vand.u32 2147483647, %v286
    %v304 = vand.u32 2147483647, %v287
    %v305 = vand.u32 2147483647, %v288
    %v306 = vand.u32 2147483647, %v289
    %v307 = vand.u32 2147483647, %v290
    %v308 = vand.u32 2147483647, %v291
    %v309 = vand.u32 2147483647, %v292
    %v310 = vand.u32 2147483647, %v293
    %v311 = vand.u32 2147483647, %v294
    %v312 = vand.u32 2147483647, %v295
    %v313 = vand.u32 2147483647, %v296
    %v314 = vand.u32 2147483647, %v297
    %v315 = vand.u32 2147483647, %v298
    %v316 = vand.u32 2147483647, %v299
    %v317 = vand.u32 2147483647, %v300
    %v318 = vand.u32 2147483647, %v301
    %v319 = vadd.f32 %v284, %v285
    %v320 = vmul.f32 %v319, 0.5
    %v321 = vsub.f32 %v285, %v284
    %v322 = vmul.f32 %v321, 0.5
    %323 = vmatprep.subr.mxu0 0.0
    %324 = vmatpush1.msra.mxu0 %v286
    %325 = vmatprep.subr.mxu0 0.0
    %326 = vmatpush1.msra.mxu0 %v287
    %327 = vmatprep.subr.mxu0 0.0
    %328 = vmatpush1.msra.mxu0 %v288
    %329 = vmatprep.subr.mxu0 0.0
    %330 = vmatpush1.msra.mxu0 %v289
    %331 = vmatprep.subr.mxu0 0.0
    %332 = vmatpush1.msra.mxu0 %v290
    %333 = vmatprep.subr.mxu0 0.0
    %334 = vmatpush1.msra.mxu0 %v291
    %335 = vmatprep.subr.mxu0 0.0
    %336 = vmatpush1.msra.mxu0 %v292
    %337 = vmatprep.subr.mxu0 0.0
    %338 = vmatpush1.msra.mxu0 %v293
    %339 = vmatprep.subr.mxu0 0.0
    %340 = vmatpush1.msra.mxu0 %v294
    %341 = vmatprep.subr.mxu0 0.0
    %342 = vmatpush1.msra.mxu0 %v295
    %343 = vmatprep.subr.mxu0 0.0
    %344 = vmatpush1.msra.mxu0 %v296
    %345 = vmatprep.subr.mxu0 0.0
    %346 = vmatpush1.msra.mxu0 %v297
    %347 = vmatprep.subr.mxu0 0.0
    %348 = vmatpush1.msra.mxu0 %v298
    %349 = vmatprep.subr.mxu0 0.0
    %350 = vmatpush1.msra.mxu0 %v299
    %351 = vmatprep.subr.mxu0 0.0
    %352 = vmatpush1.msra.mxu0 %v300
    %353 = vmatprep.subr.mxu0 0.0
    %354 = vmatpush1.msra.mxu0 %v301
    %355 = vmatprep.subr.mxu0 0.0
    %356 = vmatpush1.msra.mxu0 0.0
    %357 = vmatprep.subr.mxu0 0.0
    %358 = vmatpush1.msra.mxu0 0.0
    %359 = vmatprep.subr.mxu0 0.0
    %360 = vmatpush1.msra.mxu0 0.0
    %361 = vmatprep.subr.mxu0 0.0
    %362 = vmatpush1.msra.mxu0 0.0
    %363 = vmatprep.subr.mxu0 0.0
    %364 = vmatpush1.msra.mxu0 0.0
    %365 = vmatprep.subr.mxu0 0.0
    %366 = vmatpush1.msra.mxu0 0.0
    %367 = vmatprep.subr.mxu0 0.0
    %368 = vmatpush1.msra.mxu0 0.0
    %369 = vmatprep.subr.mxu0 0.0
    %370 = vmatpush1.msra.mxu0 0.0
    %371 = vmatprep.subr.mxu0 0.0
    %372 = vmatpush1.msra.mxu0 0.0
    %373 = vmatprep.subr.mxu0 0.0
    %374 = vmatpush1.msra.mxu0 0.0
    %375 = vmatprep.subr.mxu0 0.0
    %376 = vmatpush1.msra.mxu0 0.0
    %377 = vmatprep.subr.mxu0 0.0
    %378 = vmatpush1.msra.mxu0 0.0
    %379 = vmatprep.subr.mxu0 0.0
    %380 = vmatpush1.msra.mxu0 0.0
    %381 = vmatprep.subr.mxu0 0.0
    %382 = vmatpush1.msra.mxu0 0.0
    %383 = vmatprep.subr.mxu0 0.0
    %384 = vmatpush1.msra.mxu0 0.0
    %385 = vmatprep.subr.mxu0 0.0
    %386 = vmatpush1.msra.mxu0 0.0
    %387 = vmatprep.mubr.f32.mxu0 0.0
    %388 = vmatmul.mubr.f32.gmra.mrb[0].mxu0 %v320
    %v389 = vpop.f32.mrb[0].mxu0
    %v390 = vadd.f32 0.0, %v389
    %v391 = vpop.f32.mrb[0].mxu0
    %392 = vdwg.mxu0
    %393 = vmatprep.subr.mxu0 0.0
    %394 = vmatpush1.msra.mxu0 %v303
    %395 = vmatprep.subr.mxu0 0.0
    %396 = vmatpush1.msra.mxu0 %v304
    %397 = vmatprep.subr.mxu0 0.0
    %398 = vmatpush1.msra.mxu0 %v305
    %399 = vmatprep.subr.mxu0 0.0
    %400 = vmatpush1.msra.mxu0 %v306
    %401 = vmatprep.subr.mxu0 0.0
    %402 = vmatpush1.msra.mxu0 %v307
    %403 = vmatprep.subr.mxu0 0.0
    %404 = vmatpush1.msra.mxu0 %v308
    %405 = vmatprep.subr.mxu0 0.0
    %406 = vmatpush1.msra.mxu0 %v309
    %407 = vmatprep.subr.mxu0 0.0
    %408 = vmatpush1.msra.mxu0 %v310
    %409 = vmatprep.subr.mxu0 0.0
    %410 = vmatpush1.msra.mxu0 %v311
    %411 = vmatprep.subr.mxu0 0.0
    %412 = vmatpush1.msra.mxu0 %v312
    %413 = vmatprep.subr.mxu0 0.0
    %414 = vmatpush1.msra.mxu0 %v313
    %415 = vmatprep.subr.mxu0 0.0
    %416 = vmatpush1.msra.mxu0 %v314
    %417 = vmatprep.subr.mxu0 0.0
    %418 = vmatpush1.msra.mxu0 %v315
    %419 = vmatprep.subr.mxu0 0.0
    %420 = vmatpush1.msra.mxu0 %v316
    %421 = vmatprep.subr.mxu0 0.0
    %422 = vmatpush1.msra.mxu0 %v317
    %423 = vmatprep.subr.mxu0 0.0
    %424 = vmatpush1.msra.mxu0 %v318
    %425 = vmatprep.subr.mxu0 0.0
    %426 = vmatpush1.msra.mxu0 0.0
    %427 = vmatprep.subr.mxu0 0.0
    %428 = vmatpush1.msra.mxu0 0.0
    %429 = vmatprep.subr.mxu0 0.0
    %430 = vmatpush1.msra.mxu0 0.0
    %431 = vmatprep.subr.mxu0 0.0
    %432 = vmatpush1.msra.mxu0 0.0
    %433 = vmatprep.subr.mxu0 0.0
    %434 = vmatpush1.msra.mxu0 0.0
    %435 = vmatprep.subr.mxu0 0.0
    %436 = vmatpush1.msra.mxu0 0.0
    %437 = vmatprep.subr.mxu0 0.0
    %438 = vmatpush1.msra.mxu0 0.0
    %439 = vmatprep.subr.mxu0 0.0
    %440 = vmatpush1.msra.mxu0 0.0
    %441 = vmatprep.subr.mxu0 0.0
    %442 = vmatpush1.msra.mxu0 0.0
    %443 = vmatprep.subr.mxu0 0.0
    %444 = vmatpush1.msra.mxu0 0.0
    %445 = vmatprep.subr.mxu0 0.0
    %446 = vmatpush1.msra.mxu0 0.0
    %447 = vmatprep.subr.mxu0 0.0
    %448 = vmatpush1.msra.mxu0 0.0
    %449 = vmatprep.subr.mxu0 0.0
    %450 = vmatpush1.msra.mxu0 0.0
    %451 = vmatprep.subr.mxu0 0.0
    %452 = vmatpush1.msra.mxu0 0.0
    %453 = vmatprep.subr.mxu0 0.0
    %454 = vmatpush1.msra.mxu0 0.0
    %455 = vmatprep.subr.mxu0 0.0
    %456 = vmatpush1.msra.mxu0 0.0
    %457 = vmatprep.mubr.f32.mxu0 0.0
    %458 = vmatmul.mubr.f32.gmra.mrb[0].mxu0 %v322
    %v459 = vpop.f32.mrb[0].mxu0
    %v460 = vadd.f32 0.0, %v459
    %v461 = vpop.f32.mrb[0].mxu0
    %462 = vdwg.mxu0
    %v463 = vsub.f32 %v390, %v460
    %v465 = vlaneseq
    %v466 = vshrl.u32 %v465, 7
    %v467 = vsub.s32 0, %v466
    %v468 = vrot.slane %v302, %v467
    %v470 = vadd.f32 %v463, %v468
    %v471 = vadd.f32 %v390, %v460
    %v472 = vadd.f32 %v471, %v468
    %v473 = vsub.f32 %v472, %v470
    %474 = vmin.xlane.f32.xlu0 %v473
    %v475 = vpop.xlane.xlu0 %474
    %v476 = vrot.slane %v475, 4
    %v477 = vmin.f32 %v475, %v476
    %v478 = vrot.slane %v477, 2
    %v479 = vmin.f32 %v477, %v478
    %v480 = vrot.slane %v479, 1
    %v481 = vmin.f32 %v479, %v480
    %s482 = vtos %v481
    %s483 = smin.f32 %s281, %s482
    %484 = vst [vmem:[%s12] sm:$0xff] %v470
    %485 = vst [vmem:[%s13] sm:$0xff] %v472
    %v486 = vmax.f32 %v470, 0.0
    %v487 = vmax.f32 %v472, 0.0
    %v488 = vld [vmem:[#allocation9] sm:$0xff]
    %v489 = vld [vmem:[#allocation9 + $0x8] sm:$0xff]
    %v490 = vld [vmem:[#allocation9 + $0x10] sm:$0xff]
    %v491 = vld [vmem:[#allocation9 + $0x18] sm:$0xff]
    %v492 = vld [vmem:[#allocation9 + $0x20] sm:$0xff]
    %v493 = vld [vmem:[#allocation9 + $0x28] sm:$0xff]
    %v494 = vld [vmem:[#allocation9 + $0x30] sm:$0xff]
    %v495 = vld [vmem:[#allocation9 + $0x38] sm:$0xff]
    %v496 = vld [vmem:[#allocation9 + $0x40] sm:$0xff]
    %v497 = vld [vmem:[#allocation9 + $0x48] sm:$0xff]
    %v498 = vld [vmem:[#allocation9 + $0x50] sm:$0xff]
    %v499 = vld [vmem:[#allocation9 + $0x58] sm:$0xff]
    %v500 = vld [vmem:[#allocation9 + $0x60] sm:$0xff]
    %v501 = vld [vmem:[#allocation9 + $0x68] sm:$0xff]
    %v502 = vld [vmem:[#allocation9 + $0x70] sm:$0xff]
    %v503 = vld [vmem:[#allocation9 + $0x78] sm:$0xff]
    %v504 = vld [vmem:[%s7] sm:$0x1]
    %v505 = vand.u32 2147483647, %v488
    %v506 = vand.u32 2147483647, %v489
    %v507 = vand.u32 2147483647, %v490
    %v508 = vand.u32 2147483647, %v491
    %v509 = vand.u32 2147483647, %v492
    %v510 = vand.u32 2147483647, %v493
    %v511 = vand.u32 2147483647, %v494
    %v512 = vand.u32 2147483647, %v495
    %v513 = vand.u32 2147483647, %v496
    %v514 = vand.u32 2147483647, %v497
    %v515 = vand.u32 2147483647, %v498
    %v516 = vand.u32 2147483647, %v499
    %v517 = vand.u32 2147483647, %v500
    %v518 = vand.u32 2147483647, %v501
    %v519 = vand.u32 2147483647, %v502
    %v520 = vand.u32 2147483647, %v503
    %v521 = vadd.f32 %v486, %v487
    %v522 = vmul.f32 %v521, 0.5
    %v523 = vsub.f32 %v487, %v486
    %v524 = vmul.f32 %v523, 0.5
    %525 = vmatprep.subr.mxu0 0.0
    %526 = vmatpush1.msra.mxu0 %v488
    %527 = vmatprep.subr.mxu0 0.0
    %528 = vmatpush1.msra.mxu0 %v489
    %529 = vmatprep.subr.mxu0 0.0
    %530 = vmatpush1.msra.mxu0 %v490
    %531 = vmatprep.subr.mxu0 0.0
    %532 = vmatpush1.msra.mxu0 %v491
    %533 = vmatprep.subr.mxu0 0.0
    %534 = vmatpush1.msra.mxu0 %v492
    %535 = vmatprep.subr.mxu0 0.0
    %536 = vmatpush1.msra.mxu0 %v493
    %537 = vmatprep.subr.mxu0 0.0
    %538 = vmatpush1.msra.mxu0 %v494
    %539 = vmatprep.subr.mxu0 0.0
    %540 = vmatpush1.msra.mxu0 %v495
    %541 = vmatprep.subr.mxu0 0.0
    %542 = vmatpush1.msra.mxu0 %v496
    %543 = vmatprep.subr.mxu0 0.0
    %544 = vmatpush1.msra.mxu0 %v497
    %545 = vmatprep.subr.mxu0 0.0
    %546 = vmatpush1.msra.mxu0 %v498
    %547 = vmatprep.subr.mxu0 0.0
    %548 = vmatpush1.msra.mxu0 %v499
    %549 = vmatprep.subr.mxu0 0.0
    %550 = vmatpush1.msra.mxu0 %v500
    %551 = vmatprep.subr.mxu0 0.0
    %552 = vmatpush1.msra.mxu0 %v501
    %553 = vmatprep.subr.mxu0 0.0
    %554 = vmatpush1.msra.mxu0 %v502
    %555 = vmatprep.subr.mxu0 0.0
    %556 = vmatpush1.msra.mxu0 %v503
    %557 = vmatprep.subr.mxu0 0.0
    %558 = vmatpush1.msra.mxu0 0.0
    %559 = vmatprep.subr.mxu0 0.0
    %560 = vmatpush1.msra.mxu0 0.0
    %561 = vmatprep.subr.mxu0 0.0
    %562 = vmatpush1.msra.mxu0 0.0
    %563 = vmatprep.subr.mxu0 0.0
    %564 = vmatpush1.msra.mxu0 0.0
    %565 = vmatprep.subr.mxu0 0.0
    %566 = vmatpush1.msra.mxu0 0.0
    %567 = vmatprep.subr.mxu0 0.0
    %568 = vmatpush1.msra.mxu0 0.0
    %569 = vmatprep.subr.mxu0 0.0
    %570 = vmatpush1.msra.mxu0 0.0
    %571 = vmatprep.subr.mxu0 0.0
    %572 = vmatpush1.msra.mxu0 0.0
    %573 = vmatprep.subr.mxu0 0.0
    %574 = vmatpush1.msra.mxu0 0.0
    %575 = vmatprep.subr.mxu0 0.0
    %576 = vmatpush1.msra.mxu0 0.0
    %577 = vmatprep.subr.mxu0 0.0
    %578 = vmatpush1.msra.mxu0 0.0
    %579 = vmatprep.subr.mxu0 0.0
    %580 = vmatpush1.msra.mxu0 0.0
    %581 = vmatprep.subr.mxu0 0.0
    %582 = vmatpush1.msra.mxu0 0.0
    %583 = vmatprep.subr.mxu0 0.0
    %584 = vmatpush1.msra.mxu0 0.0
    %585 = vmatprep.subr.mxu0 0.0
    %586 = vmatpush1.msra.mxu0 0.0
    %587 = vmatprep.subr.mxu0 0.0
    %588 = vmatpush1.msra.mxu0 0.0
    %589 = vmatprep.mubr.f32.mxu0 0.0
    %590 = vmatmul.mubr.f32.gmra.mrb[0].mxu0 %v522
    %v591 = vpop.f32.mrb[0].mxu0
    %v592 = vadd.f32 0.0, %v591
    %v593 = vpop.f32.mrb[0].mxu0
    %594 = vdwg.mxu0
    %595 = vmatprep.subr.mxu0 0.0
    %596 = vmatpush1.msra.mxu0 %v505
    %597 = vmatprep.subr.mxu0 0.0
    %598 = vmatpush1.msra.mxu0 %v506
    %599 = vmatprep.subr.mxu0 0.0
    %600 = vmatpush1.msra.mxu0 %v507
    %601 = vmatprep.subr.mxu0 0.0
    %602 = vmatpush1.msra.mxu0 %v508
    %603 = vmatprep.subr.mxu0 0.0
    %604 = vmatpush1.msra.mxu0 %v509
    %605 = vmatprep.subr.mxu0 0.0
    %606 = vmatpush1.msra.mxu0 %v510
    %607 = vmatprep.subr.mxu0 0.0
    %608 = vmatpush1.msra.mxu0 %v511
    %609 = vmatprep.subr.mxu0 0.0
    %610 = vmatpush1.msra.mxu0 %v512
    %611 = vmatprep.subr.mxu0 0.0
    %612 = vmatpush1.msra.mxu0 %v513
    %613 = vmatprep.subr.mxu0 0.0
    %614 = vmatpush1.msra.mxu0 %v514
    %615 = vmatprep.subr.mxu0 0.0
    %616 = vmatpush1.msra.mxu0 %v515
    %617 = vmatprep.subr.mxu0 0.0
    %618 = vmatpush1.msra.mxu0 %v516
    %619 = vmatprep.subr.mxu0 0.0
    %620 = vmatpush1.msra.mxu0 %v517
    %621 = vmatprep.subr.mxu0 0.0
    %622 = vmatpush1.msra.mxu0 %v518
    %623 = vmatprep.subr.mxu0 0.0
    %624 = vmatpush1.msra.mxu0 %v519
    %625 = vmatprep.subr.mxu0 0.0
    %626 = vmatpush1.msra.mxu0 %v520
    %627 = vmatprep.subr.mxu0 0.0
    %628 = vmatpush1.msra.mxu0 0.0
    %629 = vmatprep.subr.mxu0 0.0
    %630 = vmatpush1.msra.mxu0 0.0
    %631 = vmatprep.subr.mxu0 0.0
    %632 = vmatpush1.msra.mxu0 0.0
    %633 = vmatprep.subr.mxu0 0.0
    %634 = vmatpush1.msra.mxu0 0.0
    %635 = vmatprep.subr.mxu0 0.0
    %636 = vmatpush1.msra.mxu0 0.0
    %637 = vmatprep.subr.mxu0 0.0
    %638 = vmatpush1.msra.mxu0 0.0
    %639 = vmatprep.subr.mxu0 0.0
    %640 = vmatpush1.msra.mxu0 0.0
    %641 = vmatprep.subr.mxu0 0.0
    %642 = vmatpush1.msra.mxu0 0.0
    %643 = vmatprep.subr.mxu0 0.0
    %644 = vmatpush1.msra.mxu0 0.0
    %645 = vmatprep.subr.mxu0 0.0
    %646 = vmatpush1.msra.mxu0 0.0
    %647 = vmatprep.subr.mxu0 0.0
    %648 = vmatpush1.msra.mxu0 0.0
    %649 = vmatprep.subr.mxu0 0.0
    %650 = vmatpush1.msra.mxu0 0.0
    %651 = vmatprep.subr.mxu0 0.0
    %652 = vmatpush1.msra.mxu0 0.0
    %653 = vmatprep.subr.mxu0 0.0
    %654 = vmatpush1.msra.mxu0 0.0
    %655 = vmatprep.subr.mxu0 0.0
    %656 = vmatpush1.msra.mxu0 0.0
    %657 = vmatprep.subr.mxu0 0.0
    %658 = vmatpush1.msra.mxu0 0.0
    %659 = vmatprep.mubr.f32.mxu0 0.0
    %660 = vmatmul.mubr.f32.gmra.mrb[0].mxu0 %v524
    %v661 = vpop.f32.mrb[0].mxu0
    %v662 = vadd.f32 0.0, %v661
    %v663 = vpop.f32.mrb[0].mxu0
    %664 = vdwg.mxu0
    %v665 = vsub.f32 %v592, %v662
    %v667 = vlaneseq
    %v668 = vshrl.u32 %v667, 7
    %v669 = vsub.s32 0, %v668
    %v670 = vrot.slane %v504, %v669
    %v672 = vadd.f32 %v665, %v670
    %v673 = vadd.f32 %v592, %v662
    %v674 = vadd.f32 %v673, %v670
    %v675 = vsub.f32 %v674, %v672
    %676 = vmin.xlane.f32.xlu0 %v675
    %v677 = vpop.xlane.xlu0 %676
    %v678 = vrot.slane %v677, 4
    %v679 = vmin.f32 %v677, %v678
    %v680 = vrot.slane %v679, 2
    %v681 = vmin.f32 %v679, %v680
    %v682 = vrot.slane %v681, 1
    %v683 = vmin.f32 %v681, %v682
    %s684 = vtos %v683
    %s685 = smin.f32 %s483, %s684
    %686 = vst [vmem:[%s8] sm:$0xff] %v672
    %687 = vst [vmem:[%s9] sm:$0xff] %v674
    %v688 = vstv %s685
    %689 = vst [vmem:[%s14] sm:$0xff] %v688
    // Predicated region
    $region54: #{_fwd_impl.1} parent=1 // pred_check
      _
    $region55: #{_fwd_impl.1} parent=1 // pred_check_branch
      %691 = sbr.rel (0) target = $region57
    $region56: #{_fwd_impl.1} parent=1 // pred_region
      _
    $region57: #{_fwd_impl.1} parent=1 // pred_fallthru
      _
    // Predicated region
    $region58: #{_fwd_impl.1} parent=1 // pred_check
      _
    $region59: #{_fwd_impl.1} parent=1 // pred_check_branch
      %693 = sbr.rel (0) target = $region61
    $region60: #{_fwd_impl.1} parent=1 // pred_region
      _
    $region61: #{_fwd_impl.1} parent=1 // pred_fallthru
      _
    // Predicated region
    $region62: #{_fwd_impl.1} parent=1 // pred_check
      _
    $region63: #{_fwd_impl.1} parent=1 // pred_check_branch
      %695 = sbr.rel (0) target = $region65
    $region64: #{_fwd_impl.1} parent=1 // pred_region
      _
    $region65: #{_fwd_impl.1} parent=1 // pred_fallthru
      _
    // Predicated region
    $region66: #{_fwd_impl.1} parent=1 // pred_check
      _
    $region67: #{_fwd_impl.1} parent=1 // pred_check_branch
      %697 = sbr.rel (0) target = $region69
    $region68: #{_fwd_impl.1} parent=1 // pred_region
      _
    $region69: #{_fwd_impl.1} parent=1 // pred_fallthru
      _
    // Predicated region
    $region70: #{_fwd_impl.1} parent=1 // pred_check
      _
    $region71: #{_fwd_impl.1} parent=1 // pred_check_branch
      %699 = sbr.rel (0) target = $region73
    $region72: #{_fwd_impl.1} parent=1 // pred_region
      _
    $region73: #{_fwd_impl.1} parent=1 // pred_fallthru
      _
    // Predicated region
    $region74: #{_fwd_impl.1} parent=1 // pred_check
      _
    $region75: #{_fwd_impl.1} parent=1 // pred_check_branch
      %701 = sbr.rel (0) target = $region77
    $region76: #{_fwd_impl.1} parent=1 // pred_region
      _
    $region77: #{_fwd_impl.1} parent=1 // pred_fallthru
      _
    // Predicated region
    $region78: #{_fwd_impl.1} parent=1 // pred_check
      _
    $region79: #{_fwd_impl.1} parent=1 // pred_check_branch
      %703 = sbr.rel (0) target = $region81
    $region80: #{_fwd_impl.1} parent=1 // pred_region
      _
    $region81: #{_fwd_impl.1} parent=1 // pred_fallthru
      _
    // Predicated region
    $region82: #{_fwd_impl.1} parent=1 // pred_check
      _
    $region83: #{_fwd_impl.1} parent=1 // pred_check_branch
      %705 = sbr.rel (0) target = $region85
    $region84: #{_fwd_impl.1} parent=1 // pred_region
      _
    $region85: #{_fwd_impl.1} parent=1 // pred_fallthru
      _
    // Predicated region
    $region86: #{_fwd_impl.1} parent=1 // pred_check
      _
    $region87: #{_fwd_impl.1} parent=1 // pred_check_branch
      %707 = sbr.rel (0) target = $region89
    $region88: #{_fwd_impl.1} parent=1 // pred_region
      _
    $region89: #{_fwd_impl.1} parent=1 // pred_fallthru
      _
    // Predicated region
    $region90: #{_fwd_impl.1} parent=1 // pred_check
      _
    $region91: #{_fwd_impl.1} parent=1 // pred_check_branch
      %709 = sbr.rel (0) target = $region93
    $region92: #{_fwd_impl.1} parent=1 // pred_region
      _
    $region93: #{_fwd_impl.1} parent=1 // pred_fallthru
      _
    // Predicated region
    $region94: #{_fwd_impl.1} parent=1 // pred_check
      _
    $region95: #{_fwd_impl.1} parent=1 // pred_check_branch
      %711 = sbr.rel (0) target = $region97
    $region96: #{_fwd_impl.1} parent=1 // pred_region
      _
    $region97: #{_fwd_impl.1} parent=1 // pred_fallthru
      _
    // Predicated region
    $region98: #{_fwd_impl.1} parent=1 // pred_check
      _
    $region99: #{_fwd_impl.1} parent=1 // pred_check_branch
      %713 = sbr.rel (0) target = $region101
    $region100: #{_fwd_impl.1} parent=1 // pred_region
      _
    $region101: #{_fwd_impl.1} parent=1 // pred_fallthru
      _
    // Predicated region
    $region102: #{_fwd_impl.1} parent=1 // pred_check
      _
    $region103: #{_fwd_impl.1} parent=1 // pred_check_branch
      %715 = sbr.rel (0) target = $region105
    $region104: #{_fwd_impl.1} parent=1 // pred_region
      _
    $region105: #{_fwd_impl.1} parent=1 // pred_fallthru
      _
    // Predicated region
    $region106: #{_fwd_impl.1} parent=1 // pred_check
      _
    $region107: #{_fwd_impl.1} parent=1 // pred_check_branch
      %717 = sbr.rel (0) target = $region109
    $region108: #{_fwd_impl.1} parent=1 // pred_region
      _
    $region109: #{_fwd_impl.1} parent=1 // pred_fallthru
      _
    %718 = vsyncpa [#allocation3], 1
    %719 = vsyncpa [#allocation5], 1
    %720 = vsyncpa [#allocation8], 1

// kernel: _fwd_impl.1
$region0: #{_fwd_impl.1}
  #allocation0 [shape = 'u32[]', space=smem, size = 0x4, offset = 0x4, fixed_abs, tag = 'smem constant byte address 0x4 - core index']
  #allocation1 [shape = 'u32[144,128]{1,0:T(1,128)}', space=vmem, size = 0x12000, scoped, tag = 'internal scratch']
  %s0 = inlined_call_operand.hbm [shape: f32[8,32], index: 0, kind: input, shape index: {}]
  %s1 = inlined_call_operand.hbm [shape: f32[8,32], index: 1, kind: input, shape index: {}]
  %s2 = inlined_call_operand.hbm [shape: f32[32,128], index: 2, kind: input, shape index: {}]
  %s3 = inlined_call_operand.vmem [shape: f32[1,128], index: 3, kind: input, shape index: {}]
  %s4 = inlined_call_operand.hbm [shape: f32[128,128], index: 4, kind: input, shape index: {}]
  %s5 = inlined_call_operand.vmem [shape: f32[1,128], index: 5, kind: input, shape index: {}]
  %s6 = inlined_call_operand.hbm [shape: f32[128,128], index: 6, kind: input, shape index: {}]
  %s7 = inlined_call_operand.vmem [shape: f32[1,128], index: 7, kind: input, shape index: {}]
  %s8 = inlined_call_operand.vmem [shape: f32[8,128], index: 8, kind: output, shape index: {0}]
  %s9 = inlined_call_operand.vmem [shape: f32[8,128], index: 9, kind: output, shape index: {1}]
  %s10 = inlined_call_operand.vmem [shape: f32[8,128], index: 10, kind: output, shape index: {2}]
  %s11 = inlined_call_operand.vmem [shape: f32[8,128], index: 11, kind: output, shape index: {3}]
  %s12 = inlined_call_operand.vmem [shape: f32[8,128], index: 12, kind: output, shape index: {4}]
  %s13 = inlined_call_operand.vmem [shape: f32[8,128], index: 13, kind: output, shape index: {5}]
  %s14 = inlined_call_operand.vmem [shape: f32[1,8,128], index: 14, kind: output, shape index: {6}]
  %15 = xla_tuple %s8, %s9, %s10, %s11, %s12, %s13, %s14
  %s16 = sld [smem:[#allocation0]]
  $region110: #{_fwd_impl.1} parent=0
    _
  %s18 = ssub.s32 1, %s16
  %s19 = scalar_select 0, %s18, %s16
  $region1: #{_fwd_impl.1} parent=0
    #allocation2 [shape = 'u8[4096]{0}', space=vmem, size = 0x1000, scoped, tag = 'input window, operand 0, single buffered']
    #allocation3 [shape = 's32[1]{0}', space=sflag, size = 0x4, scoped, tag = 'scoped memory for _fwd_impl.1']
    #allocation4 [shape = 'u8[4096]{0}', space=vmem, size = 0x1000, scoped, tag = 'input window, operand 1, single buffered']
    #allocation5 [shape = 's32[1]{0}', space=sflag, size = 0x4, scoped, tag = 'scoped memory for _fwd_impl.1']
    #allocation6 [shape = 'u8[16384]{0}', space=vmem, size = 0x4000, scoped, tag = 'input window, operand 2, single buffered']
    #allocation7 [shape = 'u8[65536]{0}', space=vmem, size = 0x10000, scoped, tag = 'input window, operand 4, single buffered']
    #allocation8 [shape = 's32[1]{0}', space=sflag, size = 0x4, scoped, tag = 'scoped memory for _fwd_impl.1']
    #allocation9 [shape = 'u8[65536]{0}', space=vmem, size = 0x10000, scoped, tag = 'input window, operand 6, single buffered']
    %20 = vsyncpa [#allocation3], 0
    %21 = vsyncpa [#allocation5], 0
    %22 = vsyncpa [#allocation8], 0
    // Predicated region
    $region2: #{_fwd_impl.1} parent=1 // pred_check
      _
    $region3: #{_fwd_impl.1} parent=1 // pred_check_branch
      %24 = sbr.rel (0) target = $region5
    $region4: #{_fwd_impl.1} parent=1 // pred_region
      %s26 = ssub.s32 128, 128
      %27 = vsyncadd [#allocation3], %s26
      %s29 = sshll.u32 [#allocation2], 4
      %s30 = int_to_ptr.vmem [resolvable:$true] %s29
      %32 = dma.hbm_to_vmem [thread:$0]  %s0, 128, %s30, [#allocation3]
    $region5: #{_fwd_impl.1} parent=1 // pred_fallthru
      _
    // Predicated region
    $region6: #{_fwd_impl.1} parent=1 // pred_check
      _
    $region7: #{_fwd_impl.1} parent=1 // pred_check_branch
      %34 = sbr.rel (0) target = $region9
    $region8: #{_fwd_impl.1} parent=1 // pred_region
      %s36 = ssub.s32 128, 128
      %37 = vsyncadd [#allocation5], %s36
      %s39 = sshll.u32 [#allocation4], 4
      %s40 = int_to_ptr.vmem [resolvable:$true] %s39
      %42 = dma.hbm_to_vmem [thread:$0]  %s1, 128, %s40, [#allocation5]
    $region9: #{_fwd_impl.1} parent=1 // pred_fallthru
      _
    // Predicated region
    $region10: #{_fwd_impl.1} parent=1 // pred_check
      _
    $region11: #{_fwd_impl.1} parent=1 // pred_check_branch
      %44 = sbr.rel (0) target = $region13
    $region12: #{_fwd_impl.1} parent=1 // pred_region
      %s46 = ssub.s32 512, 512
      %47 = vsyncadd [#allocation5], %s46
      %s48 = sshll.u32 [#allocation6], 4
      %s49 = int_to_ptr.vmem [resolvable:$true] %s48
      %54 = dma.hbm_to_vmem [thread:$0]  %s2, 512, %s49, [#allocation5], 128, 128, 8
    $region13: #{_fwd_impl.1} parent=1 // pred_fallthru
      _
    // Predicated region
    $region14: #{_fwd_impl.1} parent=1 // pred_check
      _
    $region15: #{_fwd_impl.1} parent=1 // pred_check_branch
      %56 = sbr.rel (0) target = $region17
    $region16: #{_fwd_impl.1} parent=1 // pred_region
      _
    $region17: #{_fwd_impl.1} parent=1 // pred_fallthru
      _
    // Predicated region
    $region18: #{_fwd_impl.1} parent=1 // pred_check
      _
    $region19: #{_fwd_impl.1} parent=1 // pred_check_branch
      %58 = sbr.rel (0) target = $region21
    $region20: #{_fwd_impl.1} parent=1 // pred_region
      %s60 = ssub.s32 2048, 2048
      %61 = vsyncadd [#allocation8], %s60
      %s62 = sshll.u32 [#allocation7], 4
      %s63 = int_to_ptr.vmem [resolvable:$true] %s62
      %68 = dma.hbm_to_vmem [thread:$0]  %s4, 2048, %s63, [#allocation8], 128, 128, 8
    $region21: #{_fwd_impl.1} parent=1 // pred_fallthru
      _
    // Predicated region
    $region22: #{_fwd_impl.1} parent=1 // pred_check
      _
    $region23: #{_fwd_impl.1} parent=1 // pred_check_branch
      %70 = sbr.rel (0) target = $region25
    $region24: #{_fwd_impl.1} parent=1 // pred_region
      _
    $region25: #{_fwd_impl.1} parent=1 // pred_fallthru
      _
    // Predicated region
    $region26: #{_fwd_impl.1} parent=1 // pred_check
      _
    $region27: #{_fwd_impl.1} parent=1 // pred_check_branch
      %72 = sbr.rel (0) target = $region29
    $region28: #{_fwd_impl.1} parent=1 // pred_region
      %s74 = ssub.s32 2048, 2048
      %75 = vsyncadd [#allocation8], %s74
      %s76 = sshll.u32 [#allocation9], 4
      %s77 = int_to_ptr.vmem [resolvable:$true] %s76
      %82 = dma.hbm_to_vmem [thread:$0]  %s6, 2048, %s77, [#allocation8], 128, 128, 8
    $region29: #{_fwd_impl.1} parent=1 // pred_fallthru
      _
    // Predicated region
    $region30: #{_fwd_impl.1} parent=1 // pred_check
      _
    $region31: #{_fwd_impl.1} parent=1 // pred_check_branch
      %84 = sbr.rel (0) target = $region33
    $region32: #{_fwd_impl.1} parent=1 // pred_region
      _
    $region33: #{_fwd_impl.1} parent=1 // pred_fallthru
      _
    // Predicated region
    $region34: #{_fwd_impl.1} parent=1 // pred_check
      _
    $region35: #{_fwd_impl.1} parent=1 // pred_check_branch
      %86 = sbr.rel (0) target = $region37
    $region36: #{_fwd_impl.1} parent=1 // pred_region
      %87 = dma.done [#allocation3], 128
    $region37: #{_fwd_impl.1} parent=1 // pred_fallthru
      _
    // Predicated region
    $region38: #{_fwd_impl.1} parent=1 // pred_check
      _
    $region39: #{_fwd_impl.1} parent=1 // pred_check_branch
      %89 = sbr.rel (0) target = $region41
    $region40: #{_fwd_impl.1} parent=1 // pred_region
      %90 = dma.done [#allocation5], 128
    $region41: #{_fwd_impl.1} parent=1 // pred_fallthru
      _
    // Predicated region
    $region42: #{_fwd_impl.1} parent=1 // pred_check
      _
    $region43: #{_fwd_impl.1} parent=1 // pred_check_branch
      %92 = sbr.rel (0) target = $region45
    $region44: #{_fwd_impl.1} parent=1 // pred_region
      %93 = dma.done [#allocation5], 512
    $region45: #{_fwd_impl.1} parent=1 // pred_fallthru
      _
    // Predicated region
    $region46: #{_fwd_impl.1} parent=1 // pred_check
      _
    $region47: #{_fwd_impl.1} parent=1 // pred_check_branch
      %95 = sbr.rel (0) target = $region49
    $region48: #{_fwd_impl.1} parent=1 // pred_region
      %96 = dma.done [#allocation8], 2048
    $region49: #{_fwd_impl.1} parent=1 // pred_fallthru
      _
    // Predicated region
    $region50: #{_fwd_impl.1} parent=1 // pred_check
      _
    $region51: #{_fwd_impl.1} parent=1 // pred_check_branch
      %98 = sbr.rel (0) target = $region53
    $region52: #{_fwd_impl.1} parent=1 // pred_region
      %99 = dma.done [#allocation8], 2048
    $region53: #{_fwd_impl.1} parent=1 // pred_fallthru
      _
    %v100 = vld [vmem:[#allocation2] sm:$0xff]
    %v101 = vld [vmem:[#allocation4] sm:$0xff]
    %v102 = vld [vmem:[#allocation6] sm:$0xff]
    %v103 = vld [vmem:[#allocation6 + $0x8] sm:$0xff]
    %v104 = vld [vmem:[#allocation6 + $0x10] sm:$0xff]
    %v105 = vld [vmem:[#allocation6 + $0x18] sm:$0xff]
    %v106 = vld [vmem:[%s3] sm:$0x1]
    %v107 = vand.u32 2147483647, %v102
    %v108 = vand.u32 2147483647, %v103
    %v109 = vand.u32 2147483647, %v104
    %v110 = vand.u32 2147483647, %v105
    %v111 = vadd.f32 %v100, %v101
    %v112 = vmul.f32 %v111, 0.5
    %v113 = vsub.f32 %v101, %v100
    %v114 = vmul.f32 %v113, 0.5
    %vm115 = vcmask 261120
    %v117 = vsel %vm115, %v112, 0
    %119 = vmatprep.subr.mxu0 0.0
    %120 = vmatpush1.msra.mxu0 %v102
    %121 = vmatprep.subr.mxu0 0.0
    %122 = vmatpush1.msra.mxu0 %v103
    %123 = vmatprep.subr.mxu0 0.0
    %124 = vmatpush1.msra.mxu0 %v104
    %125 = vmatprep.subr.mxu0 0.0
    %126 = vmatpush1.msra.mxu0 %v105
    %127 = vmatprep.subr.mxu0 0.0
    %128 = vmatpush1.msra.mxu0 0.0
    %129 = vmatprep.subr.mxu0 0.0
    %130 = vmatpush1.msra.mxu0 0.0
    %131 = vmatprep.subr.mxu0 0.0
    %132 = vmatpush1.msra.mxu0 0.0
    %133 = vmatprep.subr.mxu0 0.0
    %134 = vmatpush1.msra.mxu0 0.0
    %135 = vmatprep.subr.mxu0 0.0
    %136 = vmatpush1.msra.mxu0 0.0
    %137 = vmatprep.subr.mxu0 0.0
    %138 = vmatpush1.msra.mxu0 0.0
    %139 = vmatprep.subr.mxu0 0.0
    %140 = vmatpush1.msra.mxu0 0.0
    %141 = vmatprep.subr.mxu0 0.0
    %142 = vmatpush1.msra.mxu0 0.0
    %143 = vmatprep.subr.mxu0 0.0
    %144 = vmatpush1.msra.mxu0 0.0
    %145 = vmatprep.subr.mxu0 0.0
    %146 = vmatpush1.msra.mxu0 0.0
    %147 = vmatprep.subr.mxu0 0.0
    %148 = vmatpush1.msra.mxu0 0.0
    %149 = vmatprep.subr.mxu0 0.0
    %150 = vmatpush1.msra.mxu0 0.0
    %151 = vmatprep.subr.mxu0 0.0
    %152 = vmatpush1.msra.mxu0 0.0
    %153 = vmatprep.subr.mxu0 0.0
    %154 = vmatpush1.msra.mxu0 0.0
    %155 = vmatprep.subr.mxu0 0.0
    %156 = vmatpush1.msra.mxu0 0.0
    %157 = vmatprep.subr.mxu0 0.0
    %158 = vmatpush1.msra.mxu0 0.0
    %159 = vmatprep.subr.mxu0 0.0
    %160 = vmatpush1.msra.mxu0 0.0
    %161 = vmatprep.subr.mxu0 0.0
    %162 = vmatpush1.msra.mxu0 0.0
    %163 = vmatprep.subr.mxu0 0.0
    %164 = vmatpush1.msra.mxu0 0.0
    %165 = vmatprep.subr.mxu0 0.0
    %166 = vmatpush1.msra.mxu0 0.0
    %167 = vmatprep.subr.mxu0 0.0
    %168 = vmatpush1.msra.mxu0 0.0
    %169 = vmatprep.subr.mxu0 0.0
    %170 = vmatpush1.msra.mxu0 0.0
    %171 = vmatprep.subr.mxu0 0.0
    %172 = vmatpush1.msra.mxu0 0.0
    %173 = vmatprep.subr.mxu0 0.0
    %174 = vmatpush1.msra.mxu0 0.0
    %175 = vmatprep.subr.mxu0 0.0
    %176 = vmatpush1.msra.mxu0 0.0
    %177 = vmatprep.subr.mxu0 0.0
    %178 = vmatpush1.msra.mxu0 0.0
    %179 = vmatprep.subr.mxu0 0.0
    %180 = vmatpush1.msra.mxu0 0.0
    %181 = vmatprep.subr.mxu0 0.0
    %182 = vmatpush1.msra.mxu0 0.0
    %183 = vmatprep.mubr.f32.mxu0 0.0
    %184 = vmatmul.mubr.f32.gmra.mrb[0].mxu0 %v117
    %v185 = vpop.f32.mrb[0].mxu0
    %v186 = vadd.f32 0.0, %v185
    %v187 = vpop.f32.mrb[0].mxu0
    %188 = vdwg.mxu0
    %v190 = vsel %vm115, %v114, 0
    %192 = vmatprep.subr.mxu0 0.0
    %193 = vmatpush1.msra.mxu0 %v107
    %194 = vmatprep.subr.mxu0 0.0
    %195 = vmatpush1.msra.mxu0 %v108
    %196 = vmatprep.subr.mxu0 0.0
    %197 = vmatpush1.msra.mxu0 %v109
    %198 = vmatprep.subr.mxu0 0.0
    %199 = vmatpush1.msra.mxu0 %v110
    %200 = vmatprep.subr.mxu0 0.0
    %201 = vmatpush1.msra.mxu0 0.0
    %202 = vmatprep.subr.mxu0 0.0
    %203 = vmatpush1.msra.mxu0 0.0
    %204 = vmatprep.subr.mxu0 0.0
    %205 = vmatpush1.msra.mxu0 0.0
    %206 = vmatprep.subr.mxu0 0.0
    %207 = vmatpush1.msra.mxu0 0.0
    %208 = vmatprep.subr.mxu0 0.0
    %209 = vmatpush1.msra.mxu0 0.0
    %210 = vmatprep.subr.mxu0 0.0
    %211 = vmatpush1.msra.mxu0 0.0
    %212 = vmatprep.subr.mxu0 0.0
    %213 = vmatpush1.msra.mxu0 0.0
    %214 = vmatprep.subr.mxu0 0.0
    %215 = vmatpush1.msra.mxu0 0.0
    %216 = vmatprep.subr.mxu0 0.0
    %217 = vmatpush1.msra.mxu0 0.0
    %218 = vmatprep.subr.mxu0 0.0
    %219 = vmatpush1.msra.mxu0 0.0
    %220 = vmatprep.subr.mxu0 0.0
    %221 = vmatpush1.msra.mxu0 0.0
    %222 = vmatprep.subr.mxu0 0.0
    %223 = vmatpush1.msra.mxu0 0.0
    %224 = vmatprep.subr.mxu0 0.0
    %225 = vmatpush1.msra.mxu0 0.0
    %226 = vmatprep.subr.mxu0 0.0
    %227 = vmatpush1.msra.mxu0 0.0
    %228 = vmatprep.subr.mxu0 0.0
    %229 = vmatpush1.msra.mxu0 0.0
    %230 = vmatprep.subr.mxu0 0.0
    %231 = vmatpush1.msra.mxu0 0.0
    %232 = vmatprep.subr.mxu0 0.0
    %233 = vmatpush1.msra.mxu0 0.0
    %234 = vmatprep.subr.mxu0 0.0
    %235 = vmatpush1.msra.mxu0 0.0
    %236 = vmatprep.subr.mxu0 0.0
    %237 = vmatpush1.msra.mxu0 0.0
    %238 = vmatprep.subr.mxu0 0.0
    %239 = vmatpush1.msra.mxu0 0.0
    %240 = vmatprep.subr.mxu0 0.0
    %241 = vmatpush1.msra.mxu0 0.0
    %242 = vmatprep.subr.mxu0 0.0
    %243 = vmatpush1.msra.mxu0 0.0
    %244 = vmatprep.subr.mxu0 0.0
    %245 = vmatpush1.msra.mxu0 0.0
    %246 = vmatprep.subr.mxu0 0.0
    %247 = vmatpush1.msra.mxu0 0.0
    %248 = vmatprep.subr.mxu0 0.0
    %249 = vmatpush1.msra.mxu0 0.0
    %250 = vmatprep.subr.mxu0 0.0
    %251 = vmatpush1.msra.mxu0 0.0
    %252 = vmatprep.subr.mxu0 0.0
    %253 = vmatpush1.msra.mxu0 0.0
    %254 = vmatprep.subr.mxu0 0.0
    %255 = vmatpush1.msra.mxu0 0.0
    %256 = vmatprep.mubr.f32.mxu0 0.0
    %257 = vmatmul.mubr.f32.gmra.mrb[0].mxu0 %v190
    %v258 = vpop.f32.mrb[0].mxu0
    %v259 = vadd.f32 0.0, %v258
    %v260 = vpop.f32.mrb[0].mxu0
    %261 = vdwg.mxu0
    %v262 = vsub.f32 %v186, %v259
    %v264 = vlaneseq
    %v265 = vshrl.u32 %v264, 7
    %v266 = vsub.s32 0, %v265
    %v267 = vrot.slane %v106, %v266
    %v269 = vadd.f32 %v262, %v267
    %v270 = vadd.f32 %v186, %v259
    %v271 = vadd.f32 %v270, %v267
    %v272 = vsub.f32 %v271, %v269
    %273 = vmin.xlane.f32.xlu0 %v272
    %v274 = vpop.xlane.xlu0 %273
    %v275 = vrot.slane %v274, 4
    %v276 = vmin.f32 %v274, %v275
    %v277 = vrot.slane %v276, 2
    %v278 = vmin.f32 %v276, %v277
    %v279 = vrot.slane %v278, 1
    %v280 = vmin.f32 %v278, %v279
    %s281 = vtos %v280
    %282 = vst [vmem:[%s10] sm:$0xff] %v269
    %283 = vst [vmem:[%s11] sm:$0xff] %v271
    %v284 = vmax.f32 %v269, 0.0
    %v285 = vmax.f32 %v271, 0.0
    %v286 = vld [vmem:[#allocation7] sm:$0xff]
    %v287 = vld [vmem:[#allocation7 + $0x8] sm:$0xff]
    %v288 = vld [vmem:[#allocation7 + $0x10] sm:$0xff]
    %v289 = vld [vmem:[#allocation7 + $0x18] sm:$0xff]
    %v290 = vld [vmem:[#allocation7 + $0x20] sm:$0xff]
    %v291 = vld [vmem:[#allocation7 + $0x28] sm:$0xff]
    %v292 = vld [vmem:[#allocation7 + $0x30] sm:$0xff]
    %v293 = vld [vmem:[#allocation7 + $0x38] sm:$0xff]
    %v294 = vld [vmem:[#allocation7 + $0x40] sm:$0xff]
    %v295 = vld [vmem:[#allocation7 + $0x48] sm:$0xff]
    %v296 = vld [vmem:[#allocation7 + $0x50] sm:$0xff]
    %v297 = vld [vmem:[#allocation7 + $0x58] sm:$0xff]
    %v298 = vld [vmem:[#allocation7 + $0x60] sm:$0xff]
    %v299 = vld [vmem:[#allocation7 + $0x68] sm:$0xff]
    %v300 = vld [vmem:[#allocation7 + $0x70] sm:$0xff]
    %v301 = vld [vmem:[#allocation7 + $0x78] sm:$0xff]
    %v302 = vld [vmem:[%s5] sm:$0x1]
    %v303 = vand.u32 2147483647, %v286
    %v304 = vand.u32 2147483647, %v287
    %v305 = vand.u32 2147483647, %v288
    %v306 = vand.u32 2147483647, %v289
    %v307 = vand.u32 2147483647, %v290
    %v308 = vand.u32 2147483647, %v291
    %v309 = vand.u32 2147483647, %v292
    %v310 = vand.u32 2147483647, %v293
    %v311 = vand.u32 2147483647, %v294
    %v312 = vand.u32 2147483647, %v295
    %v313 = vand.u32 2147483647, %v296
    %v314 = vand.u32 2147483647, %v297
    %v315 = vand.u32 2147483647, %v298
    %v316 = vand.u32 2147483647, %v299
    %v317 = vand.u32 2147483647, %v300
    %v318 = vand.u32 2147483647, %v301
    %v319 = vadd.f32 %v284, %v285
    %v320 = vmul.f32 %v319, 0.5
    %v321 = vsub.f32 %v285, %v284
    %v322 = vmul.f32 %v321, 0.5
    %323 = vmatprep.subr.mxu0 0.0
    %324 = vmatpush1.msra.mxu0 %v286
    %325 = vmatprep.subr.mxu0 0.0
    %326 = vmatpush1.msra.mxu0 %v287
    %327 = vmatprep.subr.mxu0 0.0
    %328 = vmatpush1.msra.mxu0 %v288
    %329 = vmatprep.subr.mxu0 0.0
    %330 = vmatpush1.msra.mxu0 %v289
    %331 = vmatprep.subr.mxu0 0.0
    %332 = vmatpush1.msra.mxu0 %v290
    %333 = vmatprep.subr.mxu0 0.0
    %334 = vmatpush1.msra.mxu0 %v291
    %335 = vmatprep.subr.mxu0 0.0
    %336 = vmatpush1.msra.mxu0 %v292
    %337 = vmatprep.subr.mxu0 0.0
    %338 = vmatpush1.msra.mxu0 %v293
    %339 = vmatprep.subr.mxu0 0.0
    %340 = vmatpush1.msra.mxu0 %v294
    %341 = vmatprep.subr.mxu0 0.0
    %342 = vmatpush1.msra.mxu0 %v295
    %343 = vmatprep.subr.mxu0 0.0
    %344 = vmatpush1.msra.mxu0 %v296
    %345 = vmatprep.subr.mxu0 0.0
    %346 = vmatpush1.msra.mxu0 %v297
    %347 = vmatprep.subr.mxu0 0.0
    %348 = vmatpush1.msra.mxu0 %v298
    %349 = vmatprep.subr.mxu0 0.0
    %350 = vmatpush1.msra.mxu0 %v299
    %351 = vmatprep.subr.mxu0 0.0
    %352 = vmatpush1.msra.mxu0 %v300
    %353 = vmatprep.subr.mxu0 0.0
    %354 = vmatpush1.msra.mxu0 %v301
    %355 = vmatprep.subr.mxu0 0.0
    %356 = vmatpush1.msra.mxu0 0.0
    %357 = vmatprep.subr.mxu0 0.0
    %358 = vmatpush1.msra.mxu0 0.0
    %359 = vmatprep.subr.mxu0 0.0
    %360 = vmatpush1.msra.mxu0 0.0
    %361 = vmatprep.subr.mxu0 0.0
    %362 = vmatpush1.msra.mxu0 0.0
    %363 = vmatprep.subr.mxu0 0.0
    %364 = vmatpush1.msra.mxu0 0.0
    %365 = vmatprep.subr.mxu0 0.0
    %366 = vmatpush1.msra.mxu0 0.0
    %367 = vmatprep.subr.mxu0 0.0
    %368 = vmatpush1.msra.mxu0 0.0
    %369 = vmatprep.subr.mxu0 0.0
    %370 = vmatpush1.msra.mxu0 0.0
    %371 = vmatprep.subr.mxu0 0.0
    %372 = vmatpush1.msra.mxu0 0.0
    %373 = vmatprep.subr.mxu0 0.0
    %374 = vmatpush1.msra.mxu0 0.0
    %375 = vmatprep.subr.mxu0 0.0
    %376 = vmatpush1.msra.mxu0 0.0
    %377 = vmatprep.subr.mxu0 0.0
    %378 = vmatpush1.msra.mxu0 0.0
    %379 = vmatprep.subr.mxu0 0.0
    %380 = vmatpush1.msra.mxu0 0.0
    %381 = vmatprep.subr.mxu0 0.0
    %382 = vmatpush1.msra.mxu0 0.0
    %383 = vmatprep.subr.mxu0 0.0
    %384 = vmatpush1.msra.mxu0 0.0
    %385 = vmatprep.subr.mxu0 0.0
    %386 = vmatpush1.msra.mxu0 0.0
    %387 = vmatprep.mubr.f32.mxu0 0.0
    %388 = vmatmul.mubr.f32.gmra.mrb[0].mxu0 %v320
    %v389 = vpop.f32.mrb[0].mxu0
    %v390 = vadd.f32 0.0, %v389
    %v391 = vpop.f32.mrb[0].mxu0
    %392 = vdwg.mxu0
    %393 = vmatprep.subr.mxu0 0.0
    %394 = vmatpush1.msra.mxu0 %v303
    %395 = vmatprep.subr.mxu0 0.0
    %396 = vmatpush1.msra.mxu0 %v304
    %397 = vmatprep.subr.mxu0 0.0
    %398 = vmatpush1.msra.mxu0 %v305
    %399 = vmatprep.subr.mxu0 0.0
    %400 = vmatpush1.msra.mxu0 %v306
    %401 = vmatprep.subr.mxu0 0.0
    %402 = vmatpush1.msra.mxu0 %v307
    %403 = vmatprep.subr.mxu0 0.0
    %404 = vmatpush1.msra.mxu0 %v308
    %405 = vmatprep.subr.mxu0 0.0
    %406 = vmatpush1.msra.mxu0 %v309
    %407 = vmatprep.subr.mxu0 0.0
    %408 = vmatpush1.msra.mxu0 %v310
    %409 = vmatprep.subr.mxu0 0.0
    %410 = vmatpush1.msra.mxu0 %v311
    %411 = vmatprep.subr.mxu0 0.0
    %412 = vmatpush1.msra.mxu0 %v312
    %413 = vmatprep.subr.mxu0 0.0
    %414 = vmatpush1.msra.mxu0 %v313
    %415 = vmatprep.subr.mxu0 0.0
    %416 = vmatpush1.msra.mxu0 %v314
    %417 = vmatprep.subr.mxu0 0.0
    %418 = vmatpush1.msra.mxu0 %v315
    %419 = vmatprep.subr.mxu0 0.0
    %420 = vmatpush1.msra.mxu0 %v316
    %421 = vmatprep.subr.mxu0 0.0
    %422 = vmatpush1.msra.mxu0 %v317
    %423 = vmatprep.subr.mxu0 0.0
    %424 = vmatpush1.msra.mxu0 %v318
    %425 = vmatprep.subr.mxu0 0.0
    %426 = vmatpush1.msra.mxu0 0.0
    %427 = vmatprep.subr.mxu0 0.0
    %428 = vmatpush1.msra.mxu0 0.0
    %429 = vmatprep.subr.mxu0 0.0
    %430 = vmatpush1.msra.mxu0 0.0
    %431 = vmatprep.subr.mxu0 0.0
    %432 = vmatpush1.msra.mxu0 0.0
    %433 = vmatprep.subr.mxu0 0.0
    %434 = vmatpush1.msra.mxu0 0.0
    %435 = vmatprep.subr.mxu0 0.0
    %436 = vmatpush1.msra.mxu0 0.0
    %437 = vmatprep.subr.mxu0 0.0
    %438 = vmatpush1.msra.mxu0 0.0
    %439 = vmatprep.subr.mxu0 0.0
    %440 = vmatpush1.msra.mxu0 0.0
    %441 = vmatprep.subr.mxu0 0.0
    %442 = vmatpush1.msra.mxu0 0.0
    %443 = vmatprep.subr.mxu0 0.0
    %444 = vmatpush1.msra.mxu0 0.0
    %445 = vmatprep.subr.mxu0 0.0
    %446 = vmatpush1.msra.mxu0 0.0
    %447 = vmatprep.subr.mxu0 0.0
    %448 = vmatpush1.msra.mxu0 0.0
    %449 = vmatprep.subr.mxu0 0.0
    %450 = vmatpush1.msra.mxu0 0.0
    %451 = vmatprep.subr.mxu0 0.0
    %452 = vmatpush1.msra.mxu0 0.0
    %453 = vmatprep.subr.mxu0 0.0
    %454 = vmatpush1.msra.mxu0 0.0
    %455 = vmatprep.subr.mxu0 0.0
    %456 = vmatpush1.msra.mxu0 0.0
    %457 = vmatprep.mubr.f32.mxu0 0.0
    %458 = vmatmul.mubr.f32.gmra.mrb[0].mxu0 %v322
    %v459 = vpop.f32.mrb[0].mxu0
    %v460 = vadd.f32 0.0, %v459
    %v461 = vpop.f32.mrb[0].mxu0
    %462 = vdwg.mxu0
    %v463 = vsub.f32 %v390, %v460
    %v465 = vlaneseq
    %v466 = vshrl.u32 %v465, 7
    %v467 = vsub.s32 0, %v466
    %v468 = vrot.slane %v302, %v467
    %v470 = vadd.f32 %v463, %v468
    %v471 = vadd.f32 %v390, %v460
    %v472 = vadd.f32 %v471, %v468
    %v473 = vsub.f32 %v472, %v470
    %474 = vmin.xlane.f32.xlu0 %v473
    %v475 = vpop.xlane.xlu0 %474
    %v476 = vrot.slane %v475, 4
    %v477 = vmin.f32 %v475, %v476
    %v478 = vrot.slane %v477, 2
    %v479 = vmin.f32 %v477, %v478
    %v480 = vrot.slane %v479, 1
    %v481 = vmin.f32 %v479, %v480
    %s482 = vtos %v481
    %s483 = smin.f32 %s281, %s482
    %484 = vst [vmem:[%s12] sm:$0xff] %v470
    %485 = vst [vmem:[%s13] sm:$0xff] %v472
    %v486 = vmax.f32 %v470, 0.0
    %v487 = vmax.f32 %v472, 0.0
    %v488 = vld [vmem:[#allocation9] sm:$0xff]
    %v489 = vld [vmem:[#allocation9 + $0x8] sm:$0xff]
    %v490 = vld [vmem:[#allocation9 + $0x10] sm:$0xff]
    %v491 = vld [vmem:[#allocation9 + $0x18] sm:$0xff]
    %v492 = vld [vmem:[#allocation9 + $0x20] sm:$0xff]
    %v493 = vld [vmem:[#allocation9 + $0x28] sm:$0xff]
    %v494 = vld [vmem:[#allocation9 + $0x30] sm:$0xff]
    %v495 = vld [vmem:[#allocation9 + $0x38] sm:$0xff]
    %v496 = vld [vmem:[#allocation9 + $0x40] sm:$0xff]
    %v497 = vld [vmem:[#allocation9 + $0x48] sm:$0xff]
    %v498 = vld [vmem:[#allocation9 + $0x50] sm:$0xff]
    %v499 = vld [vmem:[#allocation9 + $0x58] sm:$0xff]
    %v500 = vld [vmem:[#allocation9 + $0x60] sm:$0xff]
    %v501 = vld [vmem:[#allocation9 + $0x68] sm:$0xff]
    %v502 = vld [vmem:[#allocation9 + $0x70] sm:$0xff]
    %v503 = vld [vmem:[#allocation9 + $0x78] sm:$0xff]
    %v504 = vld [vmem:[%s7] sm:$0x1]
    %v505 = vand.u32 2147483647, %v488
    %v506 = vand.u32 2147483647, %v489
    %v507 = vand.u32 2147483647, %v490
    %v508 = vand.u32 2147483647, %v491
    %v509 = vand.u32 2147483647, %v492
    %v510 = vand.u32 2147483647, %v493
    %v511 = vand.u32 2147483647, %v494
    %v512 = vand.u32 2147483647, %v495
    %v513 = vand.u32 2147483647, %v496
    %v514 = vand.u32 2147483647, %v497
    %v515 = vand.u32 2147483647, %v498
    %v516 = vand.u32 2147483647, %v499
    %v517 = vand.u32 2147483647, %v500
    %v518 = vand.u32 2147483647, %v501
    %v519 = vand.u32 2147483647, %v502
    %v520 = vand.u32 2147483647, %v503
    %v521 = vadd.f32 %v486, %v487
    %v522 = vmul.f32 %v521, 0.5
    %v523 = vsub.f32 %v487, %v486
    %v524 = vmul.f32 %v523, 0.5
    %525 = vmatprep.subr.mxu0 0.0
    %526 = vmatpush1.msra.mxu0 %v488
    %527 = vmatprep.subr.mxu0 0.0
    %528 = vmatpush1.msra.mxu0 %v489
    %529 = vmatprep.subr.mxu0 0.0
    %530 = vmatpush1.msra.mxu0 %v490
    %531 = vmatprep.subr.mxu0 0.0
    %532 = vmatpush1.msra.mxu0 %v491
    %533 = vmatprep.subr.mxu0 0.0
    %534 = vmatpush1.msra.mxu0 %v492
    %535 = vmatprep.subr.mxu0 0.0
    %536 = vmatpush1.msra.mxu0 %v493
    %537 = vmatprep.subr.mxu0 0.0
    %538 = vmatpush1.msra.mxu0 %v494
    %539 = vmatprep.subr.mxu0 0.0
    %540 = vmatpush1.msra.mxu0 %v495
    %541 = vmatprep.subr.mxu0 0.0
    %542 = vmatpush1.msra.mxu0 %v496
    %543 = vmatprep.subr.mxu0 0.0
    %544 = vmatpush1.msra.mxu0 %v497
    %545 = vmatprep.subr.mxu0 0.0
    %546 = vmatpush1.msra.mxu0 %v498
    %547 = vmatprep.subr.mxu0 0.0
    %548 = vmatpush1.msra.mxu0 %v499
    %549 = vmatprep.subr.mxu0 0.0
    %550 = vmatpush1.msra.mxu0 %v500
    %551 = vmatprep.subr.mxu0 0.0
    %552 = vmatpush1.msra.mxu0 %v501
    %553 = vmatprep.subr.mxu0 0.0
    %554 = vmatpush1.msra.mxu0 %v502
    %555 = vmatprep.subr.mxu0 0.0
    %556 = vmatpush1.msra.mxu0 %v503
    %557 = vmatprep.subr.mxu0 0.0
    %558 = vmatpush1.msra.mxu0 0.0
    %559 = vmatprep.subr.mxu0 0.0
    %560 = vmatpush1.msra.mxu0 0.0
    %561 = vmatprep.subr.mxu0 0.0
    %562 = vmatpush1.msra.mxu0 0.0
    %563 = vmatprep.subr.mxu0 0.0
    %564 = vmatpush1.msra.mxu0 0.0
    %565 = vmatprep.subr.mxu0 0.0
    %566 = vmatpush1.msra.mxu0 0.0
    %567 = vmatprep.subr.mxu0 0.0
    %568 = vmatpush1.msra.mxu0 0.0
    %569 = vmatprep.subr.mxu0 0.0
    %570 = vmatpush1.msra.mxu0 0.0
    %571 = vmatprep.subr.mxu0 0.0
    %572 = vmatpush1.msra.mxu0 0.0
    %573 = vmatprep.subr.mxu0 0.0
    %574 = vmatpush1.msra.mxu0 0.0
    %575 = vmatprep.subr.mxu0 0.0
    %576 = vmatpush1.msra.mxu0 0.0
    %577 = vmatprep.subr.mxu0 0.0
    %578 = vmatpush1.msra.mxu0 0.0
    %579 = vmatprep.subr.mxu0 0.0
    %580 = vmatpush1.msra.mxu0 0.0
    %581 = vmatprep.subr.mxu0 0.0
    %582 = vmatpush1.msra.mxu0 0.0
    %583 = vmatprep.subr.mxu0 0.0
    %584 = vmatpush1.msra.mxu0 0.0
    %585 = vmatprep.subr.mxu0 0.0
    %586 = vmatpush1.msra.mxu0 0.0
    %587 = vmatprep.subr.mxu0 0.0
    %588 = vmatpush1.msra.mxu0 0.0
    %589 = vmatprep.mubr.f32.mxu0 0.0
    %590 = vmatmul.mubr.f32.gmra.mrb[0].mxu0 %v522
    %v591 = vpop.f32.mrb[0].mxu0
    %v592 = vadd.f32 0.0, %v591
    %v593 = vpop.f32.mrb[0].mxu0
    %594 = vdwg.mxu0
    %595 = vmatprep.subr.mxu0 0.0
    %596 = vmatpush1.msra.mxu0 %v505
    %597 = vmatprep.subr.mxu0 0.0
    %598 = vmatpush1.msra.mxu0 %v506
    %599 = vmatprep.subr.mxu0 0.0
    %600 = vmatpush1.msra.mxu0 %v507
    %601 = vmatprep.subr.mxu0 0.0
    %602 = vmatpush1.msra.mxu0 %v508
    %603 = vmatprep.subr.mxu0 0.0
    %604 = vmatpush1.msra.mxu0 %v509
    %605 = vmatprep.subr.mxu0 0.0
    %606 = vmatpush1.msra.mxu0 %v510
    %607 = vmatprep.subr.mxu0 0.0
    %608 = vmatpush1.msra.mxu0 %v511
    %609 = vmatprep.subr.mxu0 0.0
    %610 = vmatpush1.msra.mxu0 %v512
    %611 = vmatprep.subr.mxu0 0.0
    %612 = vmatpush1.msra.mxu0 %v513
    %613 = vmatprep.subr.mxu0 0.0
    %614 = vmatpush1.msra.mxu0 %v514
    %615 = vmatprep.subr.mxu0 0.0
    %616 = vmatpush1.msra.mxu0 %v515
    %617 = vmatprep.subr.mxu0 0.0
    %618 = vmatpush1.msra.mxu0 %v516
    %619 = vmatprep.subr.mxu0 0.0
    %620 = vmatpush1.msra.mxu0 %v517
    %621 = vmatprep.subr.mxu0 0.0
    %622 = vmatpush1.msra.mxu0 %v518
    %623 = vmatprep.subr.mxu0 0.0
    %624 = vmatpush1.msra.mxu0 %v519
    %625 = vmatprep.subr.mxu0 0.0
    %626 = vmatpush1.msra.mxu0 %v520
    %627 = vmatprep.subr.mxu0 0.0
    %628 = vmatpush1.msra.mxu0 0.0
    %629 = vmatprep.subr.mxu0 0.0
    %630 = vmatpush1.msra.mxu0 0.0
    %631 = vmatprep.subr.mxu0 0.0
    %632 = vmatpush1.msra.mxu0 0.0
    %633 = vmatprep.subr.mxu0 0.0
    %634 = vmatpush1.msra.mxu0 0.0
    %635 = vmatprep.subr.mxu0 0.0
    %636 = vmatpush1.msra.mxu0 0.0
    %637 = vmatprep.subr.mxu0 0.0
    %638 = vmatpush1.msra.mxu0 0.0
    %639 = vmatprep.subr.mxu0 0.0
    %640 = vmatpush1.msra.mxu0 0.0
    %641 = vmatprep.subr.mxu0 0.0
    %642 = vmatpush1.msra.mxu0 0.0
    %643 = vmatprep.subr.mxu0 0.0
    %644 = vmatpush1.msra.mxu0 0.0
    %645 = vmatprep.subr.mxu0 0.0
    %646 = vmatpush1.msra.mxu0 0.0
    %647 = vmatprep.subr.mxu0 0.0
    %648 = vmatpush1.msra.mxu0 0.0
    %649 = vmatprep.subr.mxu0 0.0
    %650 = vmatpush1.msra.mxu0 0.0
    %651 = vmatprep.subr.mxu0 0.0
    %652 = vmatpush1.msra.mxu0 0.0
    %653 = vmatprep.subr.mxu0 0.0
    %654 = vmatpush1.msra.mxu0 0.0
    %655 = vmatprep.subr.mxu0 0.0
    %656 = vmatpush1.msra.mxu0 0.0
    %657 = vmatprep.subr.mxu0 0.0
    %658 = vmatpush1.msra.mxu0 0.0
    %659 = vmatprep.mubr.f32.mxu0 0.0
    %660 = vmatmul.mubr.f32.gmra.mrb[0].mxu0 %v524
    %v661 = vpop.f32.mrb[0].mxu0
    %v662 = vadd.f32 0.0, %v661
    %v663 = vpop.f32.mrb[0].mxu0
    %664 = vdwg.mxu0
    %v665 = vsub.f32 %v592, %v662
    %v667 = vlaneseq
    %v668 = vshrl.u32 %v667, 7
    %v669 = vsub.s32 0, %v668
    %v670 = vrot.slane %v504, %v669
    %v672 = vadd.f32 %v665, %v670
    %v673 = vadd.f32 %v592, %v662
    %v674 = vadd.f32 %v673, %v670
    %v675 = vsub.f32 %v674, %v672
    %676 = vmin.xlane.f32.xlu0 %v675
    %v677 = vpop.xlane.xlu0 %676
    %v678 = vrot.slane %v677, 4
    %v679 = vmin.f32 %v677, %v678
    %v680 = vrot.slane %v679, 2
    %v681 = vmin.f32 %v679, %v680
    %v682 = vrot.slane %v681, 1
    %v683 = vmin.f32 %v681, %v682
    %s684 = vtos %v683
    %s685 = smin.f32 %s483, %s684
    %686 = vst [vmem:[%s8] sm:$0xff] %v672
    %687 = vst [vmem:[%s9] sm:$0xff] %v674
    %v688 = vstv %s685
    %689 = vst [vmem:[%s14] sm:$0xff] %v688
    // Predicated region
    $region54: #{_fwd_impl.1} parent=1 // pred_check
      _
    $region55: #{_fwd_impl.1} parent=1 // pred_check_branch
      %691 = sbr.rel (0) target = $region57
    $region56: #{_fwd_impl.1} parent=1 // pred_region
      _
    $region57: #{_fwd_impl.1} parent=1 // pred_fallthru
      _
    // Predicated region
    $region58: #{_fwd_impl.1} parent=1 // pred_check
      _
    $region59: #{_fwd_impl.1} parent=1 // pred_check_branch
      %693 = sbr.rel (0) target = $region61
    $region60: #{_fwd_impl.1} parent=1 // pred_region
      _
    $region61: #{_fwd_impl.1} parent=1 // pred_fallthru
      _
    // Predicated region
    $region62: #{_fwd_impl.1} parent=1 // pred_check
      _
    $region63: #{_fwd_impl.1} parent=1 // pred_check_branch
      %695 = sbr.rel (0) target = $region65
    $region64: #{_fwd_impl.1} parent=1 // pred_region
      _
    $region65: #{_fwd_impl.1} parent=1 // pred_fallthru
      _
    // Predicated region
    $region66: #{_fwd_impl.1} parent=1 // pred_check
      _
    $region67: #{_fwd_impl.1} parent=1 // pred_check_branch
      %697 = sbr.rel (0) target = $region69
    $region68: #{_fwd_impl.1} parent=1 // pred_region
      _
    $region69: #{_fwd_impl.1} parent=1 // pred_fallthru
      _
    // Predicated region
    $region70: #{_fwd_impl.1} parent=1 // pred_check
      _
    $region71: #{_fwd_impl.1} parent=1 // pred_check_branch
      %699 = sbr.rel (0) target = $region73
    $region72: #{_fwd_impl.1} parent=1 // pred_region
      _
    $region73: #{_fwd_impl.1} parent=1 // pred_fallthru
      _
    // Predicated region
    $region74: #{_fwd_impl.1} parent=1 // pred_check
      _
    $region75: #{_fwd_impl.1} parent=1 // pred_check_branch
      %701 = sbr.rel (0) target = $region77
    $region76: #{_fwd_impl.1} parent=1 // pred_region
      _
    $region77: #{_fwd_impl.1} parent=1 // pred_fallthru
      _
    // Predicated region
    $region78: #{_fwd_impl.1} parent=1 // pred_check
      _
    $region79: #{_fwd_impl.1} parent=1 // pred_check_branch
      %703 = sbr.rel (0) target = $region81
    $region80: #{_fwd_impl.1} parent=1 // pred_region
      _
    $region81: #{_fwd_impl.1} parent=1 // pred_fallthru
      _
    // Predicated region
    $region82: #{_fwd_impl.1} parent=1 // pred_check
      _
    $region83: #{_fwd_impl.1} parent=1 // pred_check_branch
      %705 = sbr.rel (0) target = $region85
    $region84: #{_fwd_impl.1} parent=1 // pred_region
      _
    $region85: #{_fwd_impl.1} parent=1 // pred_fallthru
      _
    // Predicated region
    $region86: #{_fwd_impl.1} parent=1 // pred_check
      _
    $region87: #{_fwd_impl.1} parent=1 // pred_check_branch
      %707 = sbr.rel (0) target = $region89
    $region88: #{_fwd_impl.1} parent=1 // pred_region
      _
    $region89: #{_fwd_impl.1} parent=1 // pred_fallthru
      _
    // Predicated region
    $region90: #{_fwd_impl.1} parent=1 // pred_check
      _
    $region91: #{_fwd_impl.1} parent=1 // pred_check_branch
      %709 = sbr.rel (0) target = $region93
    $region92: #{_fwd_impl.1} parent=1 // pred_region
      _
    $region93: #{_fwd_impl.1} parent=1 // pred_fallthru
      _
    // Predicated region
    $region94: #{_fwd_impl.1} parent=1 // pred_check
      _
    $region95: #{_fwd_impl.1} parent=1 // pred_check_branch
      %711 = sbr.rel (0) target = $region97
    $region96: #{_fwd_impl.1} parent=1 // pred_region
      _
    $region97: #{_fwd_impl.1} parent=1 // pred_fallthru
      _
    // Predicated region
    $region98: #{_fwd_impl.1} parent=1 // pred_check
      _
    $region99: #{_fwd_impl.1} parent=1 // pred_check_branch
      %713 = sbr.rel (0) target = $region101
    $region100: #{_fwd_impl.1} parent=1 // pred_region
      _
    $region101: #{_fwd_impl.1} parent=1 // pred_fallthru
      _
    // Predicated region
    $region102: #{_fwd_impl.1} parent=1 // pred_check
      _
    $region103: #{_fwd_impl.1} parent=1 // pred_check_branch
      %715 = sbr.rel (0) target = $region105
    $region104: #{_fwd_impl.1} parent=1 // pred_region
      _
    $region105: #{_fwd_impl.1} parent=1 // pred_fallthru
      _
    // Predicated region
    $region106: #{_fwd_impl.1} parent=1 // pred_check
      _
    $region107: #{_fwd_impl.1} parent=1 // pred_check_branch
      %717 = sbr.rel (0) target = $region109
    $region108: #{_fwd_impl.1} parent=1 // pred_region
      _
    $region109: #{_fwd_impl.1} parent=1 // pred_fallthru
      _
    %718 = vsyncpa [#allocation3], 1
    %719 = vsyncpa [#allocation5], 1
    %720 = vsyncpa [#allocation8], 1

</llo_original>
